<compile_context>
chip_gen: v7x
topology: tpu7x:2x2x1
jax: 0.10.0
libtpu: 0.0.40
codegen_flags: <defaults>
</compile_context>

<pallas_src>
import functools
import math

import jax
import jax.numpy as jnp
from jax import lax
from jax.experimental import pallas as pl
from jax.experimental.pallas import tpu as pltpu


def _nc_mha_kernel(x_ref, wq_ref, wk_ref, wv_ref, wo_ref, alpha_ref, o_ref,
                   *scratch,
                   theta: float, d_k: int, q_tile: int, heads_per_step: int,
                   acc_in_out: bool, weights_resident: bool,
                   use_kv_cache: bool):
    """One grid step = (batch b, query tile qi, head-group g)."""
    qi = pl.program_id(1)
    g = pl.program_id(2)

    si = 0
    if use_kv_cache:
        k_cache_ref, v_cache_ref = scratch[0], scratch[1]
        si = 2
    acc_ref = None if acc_in_out else scratch[si]

    widx = g if weights_resident else 0
    S = x_ref.shape[1]

    def corrected_kv(x_all):
        alpha = alpha_ref[0]                                   # SMEM scalar
        k = jnp.dot(x_all, wk_ref[widx], preferred_element_type=jnp.float32)
        v = jnp.dot(x_all, wv_ref[widx], preferred_element_type=jnp.float32)
        k = k + theta * jnp.cos(k)
        v = v + (alpha * theta) * jnp.tanh(v)
        return k.astype(jnp.bfloat16), v.astype(jnp.bfloat16)  # (S, hp*d_k)

    if use_kv_cache:
        # Fill this batch's corrected K/V cache for this head group once, at
        # the first query tile; later query tiles reuse it.
        @pl.when(qi == 0)
        def _fill_kv():
            k_b, v_b = corrected_kv(x_ref[0])
            k_cache_ref[g] = k_b
            v_cache_ref[g] = v_b

        k_g = k_cache_ref[g]
        v_g = v_cache_ref[g]
    else:
        k_g, v_g = corrected_kv(x_ref[0])

    # Query tile, sliced from the per-batch resident x block (no separate
    # x_q input stream -> x is DMA'd from HBM once per batch).
    if q_tile == S:
        x_q = x_ref[0]                                          # (TQ=S, D)
    else:
        row0 = pl.multiple_of(qi * q_tile, q_tile)
        x_q = x_ref[0, pl.ds(row0, q_tile), :]                  # (TQ, D)

    # Packed Q projection for the whole head group (wide MXU matmul).
    q = jnp.dot(x_q, wq_ref[widx], preferred_element_type=jnp.float32)
    q = q + theta * jnp.sin(q)                                  # NC correction
    q = (q * (1.0 / math.sqrt(d_k))).astype(jnp.bfloat16)       # fold softmax scale

    # Per-head attention inside the packed group (static lane slices).
    outs = []
    for h in range(heads_per_step):
        lo = h * d_k
        q_h = q[:, lo:lo + d_k]
        k_h = k_g[:, lo:lo + d_k]
        v_h = v_g[:, lo:lo + d_k]
        s = lax.dot_general(q_h, k_h, (((1,), (1,)), ((), ())),
                            preferred_element_type=jnp.float32)  # (TQ, S)
        m = jnp.max(s, axis=-1, keepdims=True)
        p = jnp.exp(s - m)
        l = jnp.sum(p, axis=-1, keepdims=True)
        o_h = jnp.dot(p.astype(jnp.bfloat16), v_h,
                      preferred_element_type=jnp.float32)        # (TQ, d_k)
        o_h = o_h * pl.reciprocal(l, approx=False)               # exact EUP recip
        outs.append(o_h.astype(jnp.bfloat16))
    o_g = outs[0] if heads_per_step == 1 else jnp.concatenate(outs, axis=-1)

    # Group contribution to the output projection:
    #   sum_g  o_g @ W_o[group-g rows]  ==  concat(all heads) @ W_o.
    contrib = jnp.dot(o_g, wo_ref[widx], preferred_element_type=jnp.float32)

    if acc_in_out:
        # f32 output: accumulate directly into the resident output block.
        @pl.when(g == 0)
        def _init():
            o_ref[0] = contrib.astype(o_ref.dtype)

        @pl.when(g != 0)
        def _acc():
            o_ref[0] += contrib.astype(o_ref.dtype)
    else:
        @pl.when(g == 0)
        def _init():
            acc_ref[...] = contrib

        @pl.when(g != 0)
        def _acc():
            acc_ref[...] += contrib

        @pl.when(g == pl.num_programs(2) - 1)
        def _finalize():
            o_ref[0] = acc_ref[...].astype(o_ref.dtype)


def nc_mha_forward(x, w_q, w_k, w_v, w_o, alpha, *, n_heads: int, theta: float,
                   q_tile=None, heads_per_step=None):
    B, S, D = x.shape
    assert D % n_heads == 0
    d_k = D // n_heads

    # --- Hardware-aware budgets (graceful fallback if info unavailable) ---
    try:
        vmem_cap = int(pltpu.get_tpu_info().vmem_capacity_bytes)
    except Exception:
        vmem_cap = 128 * 1024 * 1024
    small_vmem = vmem_cap <= 80 * 1024 * 1024               # v7x-class (64 MiB)
    vmem_limit = max(32 * 1024 * 1024,
                     min(vmem_cap - 16 * 1024 * 1024, 100 * 1024 * 1024))

    # --- Head packing: fill the 256-wide MXU on v6e/v7x --------------------
    if heads_per_step is None:
        heads_per_step = 1
        for hp in range(n_heads, 0, -1):
            if n_heads % hp == 0 and hp * d_k <= 256:
                heads_per_step = hp
                break
    assert n_heads % heads_per_step == 0
    gd = heads_per_step * d_k
    n_groups = n_heads // heads_per_step

    # --- Query tiling -------------------------------------------------------
    if q_tile is None:
        cap = 512 if small_vmem else 1024
        if S <= cap:
            q_tile = S
        else:
            q_tile = S                      # correct fallback: untiled queries
            for t in range(cap, 7, -1):     # largest divisor of S, multiple of 8
                if S % t == 0 and t % 8 == 0:
                    q_tile = t
                    break
    assert S % q_tile == 0
    assert q_tile == S or q_tile % 8 == 0
    n_q = S // q_tile

    use_kv_cache = n_q > 1
    out_dtype = x.dtype
    acc_in_out = (out_dtype == jnp.float32)
    weights_resident = (8 * D * D) <= (vmem_cap // 4)       # 4 bf16 D x D tensors

    # Head-group-major weight layouts (prepared once, outside the kernel):
    #   wq_g[g] == W_q[:, g*gd:(g+1)*gd]   (likewise wk_g, wv_g)
    #   wo_g[g] == W_o[g*gd:(g+1)*gd, :]
    wq_g = w_q.reshape(D, n_groups, gd).transpose(1, 0, 2).astype(jnp.bfloat16)
    wk_g = w_k.reshape(D, n_groups, gd).transpose(1, 0, 2).astype(jnp.bfloat16)
    wv_g = w_v.reshape(D, n_groups, gd).transpose(1, 0, 2).astype(jnp.bfloat16)
    wo_g = w_o.reshape(n_groups, gd, D).astype(jnp.bfloat16)
    x_bf = x.astype(jnp.bfloat16)
    alpha1 = alpha.reshape(1).astype(jnp.float32)

    kernel = functools.partial(
        _nc_mha_kernel, theta=float(theta), d_k=d_k, q_tile=q_tile,
        heads_per_step=heads_per_step, acc_in_out=acc_in_out,
        weights_resident=weights_resident, use_kv_cache=use_kv_cache)

    # x block is resident per batch (index changes only with b).  On a small-
    # VMEM chip (v7x) single-buffer it when large: the one exposed DMA per
    # batch is amortised over n_q * n_groups steps and halves its footprint.
    if small_vmem and 2 * S * D > (2 << 20):
        x_spec = pl.BlockSpec((1, S, D), lambda b, qi, g: (b, 0, 0),
                              pipeline_mode=pl.Buffered(1))
    else:
        x_spec = pl.BlockSpec((1, S, D), lambda b, qi, g: (b, 0, 0))

    if weights_resident:
        w_lead = n_groups
        w_idx = lambda b, qi, g: (0, 0, 0)   # constant index -> DMA'd once
    else:
        w_lead = 1
        w_idx = lambda b, qi, g: (g, 0, 0)   # stream per head group (huge D)

    in_specs = [
        x_spec,
        pl.BlockSpec((w_lead, D, gd), w_idx),                    # W_q group cols
        pl.BlockSpec((w_lead, D, gd), w_idx),                    # W_k group cols
        pl.BlockSpec((w_lead, D, gd), w_idx),                    # W_v group cols
        pl.BlockSpec((w_lead, gd, D), w_idx),                    # W_o group rows
        pl.BlockSpec(memory_space=pltpu.MemorySpace.SMEM),       # alpha scalar
    ]

    scratch_shapes = []
    if use_kv_cache:
        scratch_shapes += [pltpu.VMEM((n_groups, S, gd), jnp.bfloat16),  # K cache
                           pltpu.VMEM((n_groups, S, gd), jnp.bfloat16)]  # V cache
    if not acc_in_out:
        scratch_shapes += [pltpu.VMEM((q_tile, D), jnp.float32)]

    # Advisory cost estimate (single-pass K/V, weights read once, x once/batch).
    flops = int(B * (8 * S * D * D + 4 * S * S * D))
    transcendentals = int(B * (3 * S * D + n_heads * S * S))
    bytes_accessed = int(B * S * D * 2 + 8 * D * D
                         + B * S * D * x.dtype.itemsize)

    grid_spec = pltpu.PrefetchScalarGridSpec(
        num_scalar_prefetch=0,
        grid=(B, n_q, n_groups),
        in_specs=in_specs,
        out_specs=pl.BlockSpec((1, q_tile, D), lambda b, qi, g: (b, qi, 0)),
        scratch_shapes=scratch_shapes,
    )

    qi_semantics = "arbitrary" if use_kv_cache else "parallel"

    return pl.pallas_call(
        kernel,
        out_shape=jax.ShapeDtypeStruct((B, S, D), out_dtype),
        grid_spec=grid_spec,
        compiler_params=pltpu.CompilerParams(
            dimension_semantics=("parallel", qi_semantics, "arbitrary"),
            vmem_limit_bytes=vmem_limit,
        ),
        cost_estimate=pl.CostEstimate(
            flops=flops,
            transcendentals=transcendentals,
            bytes_accessed=bytes_accessed),
    )(x_bf, wq_g, wk_g, wv_g, wo_g, alpha1)


def nc_mha_reference(x, w_q, w_k, w_v, w_o, alpha, *, n_heads: int, theta: float):
    """Pure-JAX f32 reference mirroring the PyTorch forward."""
    B, S, D = x.shape
    d_k = D // n_heads
    q = x @ w_q
    k = x @ w_k
    v = x @ w_v
    q = q + theta * jnp.sin(q)
    k = k + theta * jnp.cos(k)
    v = v + alpha.reshape(()) * theta * jnp.tanh(v)

    def split(t):
        return t.reshape(B, S, n_heads, d_k).transpose(0, 2, 1, 3)  # (B,H,S,dk)

    qh, kh, vh = split(q), split(k), split(v)
    scores = jnp.einsum("bhqd,bhkd->bhqk", qh, kh) / math.sqrt(d_k)
    attn = jax.nn.softmax(scores, axis=-1)
    out = jnp.einsum("bhqk,bhkd->bhqd", attn, vh)
    out = out.transpose(0, 2, 1, 3).reshape(B, S, D)
    return out @ w_o


if __name__ == "__main__":
    d_model = 32
    n_heads = 4
    theta = 0.1
    B, S = 2, 16

    key = jax.random.PRNGKey(0)
    kx, kq, kk, kv, ko = jax.random.split(key, 5)

    scale = math.sqrt(1.0 / d_model)
    x = jax.random.normal(kx, (B, S, d_model), dtype=jnp.float32)
    w_q = jax.random.normal(kq, (d_model, d_model), dtype=jnp.float32) * scale
    w_k = jax.random.normal(kk, (d_model, d_model), dtype=jnp.float32) * scale
    w_v = jax.random.normal(kv, (d_model, d_model), dtype=jnp.float32) * scale
    w_o = jax.random.normal(ko, (d_model, d_model), dtype=jnp.float32) * scale
    alpha = jnp.ones((1,), dtype=jnp.float32)

    ref = nc_mha_reference(x, w_q, w_k, w_v, w_o, alpha,
                           n_heads=n_heads, theta=theta)
    ref = jax.block_until_ready(ref)

    # Config 1: auto tiling — single query tile, all heads packed in one group
    # (exercises the no-KV-cache / single-group / packed-projection path).
    out1 = nc_mha_forward(x, w_q, w_k, w_v, w_o, alpha,
                          n_heads=n_heads, theta=theta)
    out1 = jax.block_until_ready(out1)

    # Config 2: 2 query tiles x 2 head groups — exercises the per-batch K/V
    # cache fill + reuse across query tiles and cross-group output
    # accumulation directly into the f32 output block.
    out2 = nc_mha_forward(x, w_q, w_k, w_v, w_o, alpha,
                          n_heads=n_heads, theta=theta,
                          q_tile=8, heads_per_step=2)
    out2 = jax.block_until_ready(out2)

    for name, out in (("auto", out1), ("tiled", out2)):
        assert out.shape == (B, S, d_model)
        max_err = float(jnp.max(jnp.abs(out - ref)))
        # bf16 MXU operands vs. a pure-f32 reference; typical max-abs-diff at
        # these shapes is ~1e-2.
        assert jnp.allclose(out, ref, atol=1e-1, rtol=1e-1), (
            f"[{name}] max abs diff {max_err}")

    print("KERNEL_OK")
</pallas_src>

<mosaic_0001>
module attributes {stable_mosaic.version = 11 : i64} {
  func.func @_nc_mha_kernel(%arg0: i32, %arg1: i32, %arg2: i32, %arg3: memref<1x16x32xbf16, #tpu.memory_space<vmem>>, %arg4: memref<1x32x32xbf16, #tpu.memory_space<vmem>>, %arg5: memref<1x32x32xbf16, #tpu.memory_space<vmem>>, %arg6: memref<1x32x32xbf16, #tpu.memory_space<vmem>>, %arg7: memref<1x32x32xbf16, #tpu.memory_space<vmem>>, %arg8: memref<1xf32, #tpu.memory_space<smem>>, %arg9: memref<1x16x32xf32, #tpu.memory_space<vmem>>) attributes {dimension_semantics = [#tpu.dimension_semantics<parallel>, #tpu.dimension_semantics<parallel>, #tpu.dimension_semantics<arbitrary>], iteration_bounds = array<i64: 2, 1, 1>, scalar_prefetch = 0 : i64, scratch_operands = 0 : i64, tpu.core_type = #tpu.core_type<tc>, window_params = [{transform_indices = @transform_0, window_bounds = array<i64: 1, 16, 32>}, {pipeline_mode = #tpu.pipeline_mode<synchronous>, transform_indices = @transform_1, window_bounds = array<i64: 1, 32, 32>}, {pipeline_mode = #tpu.pipeline_mode<synchronous>, transform_indices = @transform_2, window_bounds = array<i64: 1, 32, 32>}, {pipeline_mode = #tpu.pipeline_mode<synchronous>, transform_indices = @transform_3, window_bounds = array<i64: 1, 32, 32>}, {pipeline_mode = #tpu.pipeline_mode<synchronous>, transform_indices = @transform_4, window_bounds = array<i64: 1, 32, 32>}, {transform_indices = @transform_5, window_bounds = array<i64: 1>}, {transform_indices = @transform_6, window_bounds = array<i64: 1, 16, 32>}]} {
    %c0 = arith.constant 0 : index
    %c0_0 = arith.constant 0 : index
    %c0_1 = arith.constant 0 : index
    %0 = vector.load %arg3[%c0, %c0_0, %c0_1] : memref<1x16x32xbf16, #tpu.memory_space<vmem>>, vector<1x16x32xbf16>
    %1 = vector.shape_cast %0 : vector<1x16x32xbf16> to vector<16x32xbf16>
    %c0_2 = arith.constant 0 : index
    %2 = memref.load %arg8[%c0_2] : memref<1xf32, #tpu.memory_space<smem>>
    %3 = arith.index_cast %arg2 : i32 to index
    %c0_3 = arith.constant 0 : index
    %c0_4 = arith.constant 0 : index
    %4 = vector.load %arg5[%3, %c0_3, %c0_4] : memref<1x32x32xbf16, #tpu.memory_space<vmem>>, vector<1x32x32xbf16>
    %5 = vector.shape_cast %4 : vector<1x32x32xbf16> to vector<32x32xbf16>
    %cst = arith.constant dense<0.000000e+00> : vector<16x32xf32>
    %6 = tpu.matmul %1, %5, %cst {dimension_numbers = #tpu.dot_dimension_numbers<[1], [0], [0], [1], [0, 0, 1, 1], [], []>} : vector<16x32xbf16>, vector<32x32xbf16>, vector<16x32xf32> -> vector<16x32xf32>
    %7 = arith.index_cast %arg2 : i32 to index
    %c0_5 = arith.constant 0 : index
    %c0_6 = arith.constant 0 : index
    %8 = vector.load %arg6[%7, %c0_5, %c0_6] : memref<1x32x32xbf16, #tpu.memory_space<vmem>>, vector<1x32x32xbf16>
    %9 = vector.shape_cast %8 : vector<1x32x32xbf16> to vector<32x32xbf16>
    %cst_7 = arith.constant dense<0.000000e+00> : vector<16x32xf32>
    %10 = tpu.matmul %1, %9, %cst_7 {dimension_numbers = #tpu.dot_dimension_numbers<[1], [0], [0], [1], [0, 0, 1, 1], [], []>} : vector<16x32xbf16>, vector<32x32xbf16>, vector<16x32xf32> -> vector<16x32xf32>
    %11 = math.cos %6 : vector<16x32xf32>
    %cst_8 = arith.constant 1.000000e-01 : f32
    %12 = vector.broadcast %cst_8 : f32 to vector<16x32xf32>
    %13 = arith.mulf %12, %11 : vector<16x32xf32>
    %14 = arith.addf %6, %13 : vector<16x32xf32>
    %cst_9 = arith.constant 1.000000e-01 : f32
    %15 = arith.mulf %2, %cst_9 : f32
    %16 = math.tanh %10 : vector<16x32xf32>
    %17 = vector.broadcast %15 : f32 to vector<16x32xf32>
    %18 = arith.mulf %17, %16 : vector<16x32xf32>
    %19 = arith.addf %10, %18 : vector<16x32xf32>
    %20 = arith.truncf %14 : vector<16x32xf32> to vector<16x32xbf16>
    %21 = arith.truncf %19 : vector<16x32xf32> to vector<16x32xbf16>
    %c0_10 = arith.constant 0 : index
    %c0_11 = arith.constant 0 : index
    %c0_12 = arith.constant 0 : index
    %22 = vector.load %arg3[%c0_10, %c0_11, %c0_12] : memref<1x16x32xbf16, #tpu.memory_space<vmem>>, vector<1x16x32xbf16>
    %23 = vector.shape_cast %22 : vector<1x16x32xbf16> to vector<16x32xbf16>
    %24 = arith.index_cast %arg2 : i32 to index
    %c0_13 = arith.constant 0 : index
    %c0_14 = arith.constant 0 : index
    %25 = vector.load %arg4[%24, %c0_13, %c0_14] : memref<1x32x32xbf16, #tpu.memory_space<vmem>>, vector<1x32x32xbf16>
    %26 = vector.shape_cast %25 : vector<1x32x32xbf16> to vector<32x32xbf16>
    %cst_15 = arith.constant dense<0.000000e+00> : vector<16x32xf32>
    %27 = tpu.matmul %23, %26, %cst_15 {dimension_numbers = #tpu.dot_dimension_numbers<[1], [0], [0], [1], [0, 0, 1, 1], [], []>} : vector<16x32xbf16>, vector<32x32xbf16>, vector<16x32xf32> -> vector<16x32xf32>
    %28 = math.sin %27 : vector<16x32xf32>
    %cst_16 = arith.constant 1.000000e-01 : f32
    %29 = vector.broadcast %cst_16 : f32 to vector<16x32xf32>
    %30 = arith.mulf %29, %28 : vector<16x32xf32>
    %31 = arith.addf %27, %30 : vector<16x32xf32>
    %cst_17 = arith.constant 0.353553385 : f32
    %32 = vector.broadcast %cst_17 : f32 to vector<16x32xf32>
    %33 = arith.mulf %31, %32 : vector<16x32xf32>
    %34 = arith.truncf %33 : vector<16x32xf32> to vector<16x32xbf16>
    %35 = vector.extract_strided_slice %34 {offsets = [0, 0], sizes = [16, 8], strides = [1, 1]} : vector<16x32xbf16> to vector<16x8xbf16>
    %36 = vector.extract_strided_slice %20 {offsets = [0, 0], sizes = [16, 8], strides = [1, 1]} : vector<16x32xbf16> to vector<16x8xbf16>
    %37 = vector.extract_strided_slice %21 {offsets = [0, 0], sizes = [16, 8], strides = [1, 1]} : vector<16x32xbf16> to vector<16x8xbf16>
    %cst_18 = arith.constant dense<0.000000e+00> : vector<16x16xf32>
    %38 = tpu.matmul %35, %36, %cst_18 {dimension_numbers = #tpu.dot_dimension_numbers<[1], [1], [0], [0], [0, 0, 1, 0], [], []>} : vector<16x8xbf16>, vector<16x8xbf16>, vector<16x16xf32> -> vector<16x16xf32>
    %cst_19 = arith.constant dense<0xFF800000> : vector<16xf32>
    %39 = vector.multi_reduction <maximumf>, %38, %cst_19 [1] : vector<16x16xf32> to vector<16xf32>
    %40 = vector.shape_cast %39 : vector<16xf32> to vector<16x1xf32>
    %41 = vector.broadcast %40 : vector<16x1xf32> to vector<16x16xf32>
    %42 = arith.subf %38, %41 : vector<16x16xf32>
    %43 = math.exp %42 : vector<16x16xf32>
    %cst_20 = arith.constant dense<0.000000e+00> : vector<16xf32>
    %44 = vector.multi_reduction <add>, %43, %cst_20 [1] : vector<16x16xf32> to vector<16xf32>
    %45 = vector.shape_cast %44 : vector<16xf32> to vector<16x1xf32>
    %46 = arith.truncf %43 : vector<16x16xf32> to vector<16x16xbf16>
    %cst_21 = arith.constant dense<0.000000e+00> : vector<16x8xf32>
    %47 = tpu.matmul %46, %37, %cst_21 {dimension_numbers = #tpu.dot_dimension_numbers<[1], [0], [0], [1], [0, 0, 1, 1], [], []>} : vector<16x16xbf16>, vector<16x8xbf16>, vector<16x8xf32> -> vector<16x8xf32>
    %48 = tpu.reciprocal %45 : vector<16x1xf32> -> vector<16x1xf32>
    %49 = vector.broadcast %48 : vector<16x1xf32> to vector<16x8xf32>
    %50 = arith.mulf %47, %49 : vector<16x8xf32>
    %51 = arith.truncf %50 : vector<16x8xf32> to vector<16x8xbf16>
    %52 = vector.extract_strided_slice %34 {offsets = [0, 8], sizes = [16, 8], strides = [1, 1]} : vector<16x32xbf16> to vector<16x8xbf16>
    %53 = vector.extract_strided_slice %20 {offsets = [0, 8], sizes = [16, 8], strides = [1, 1]} : vector<16x32xbf16> to vector<16x8xbf16>
    %54 = vector.extract_strided_slice %21 {offsets = [0, 8], sizes = [16, 8], strides = [1, 1]} : vector<16x32xbf16> to vector<16x8xbf16>
    %cst_22 = arith.constant dense<0.000000e+00> : vector<16x16xf32>
    %55 = tpu.matmul %52, %53, %cst_22 {dimension_numbers = #tpu.dot_dimension_numbers<[1], [1], [0], [0], [0, 0, 1, 0], [], []>} : vector<16x8xbf16>, vector<16x8xbf16>, vector<16x16xf32> -> vector<16x16xf32>
    %cst_23 = arith.constant dense<0xFF800000> : vector<16xf32>
    %56 = vector.multi_reduction <maximumf>, %55, %cst_23 [1] : vector<16x16xf32> to vector<16xf32>
    %57 = vector.shape_cast %56 : vector<16xf32> to vector<16x1xf32>
    %58 = vector.broadcast %57 : vector<16x1xf32> to vector<16x16xf32>
    %59 = arith.subf %55, %58 : vector<16x16xf32>
    %60 = math.exp %59 : vector<16x16xf32>
    %cst_24 = arith.constant dense<0.000000e+00> : vector<16xf32>
    %61 = vector.multi_reduction <add>, %60, %cst_24 [1] : vector<16x16xf32> to vector<16xf32>
    %62 = vector.shape_cast %61 : vector<16xf32> to vector<16x1xf32>
    %63 = arith.truncf %60 : vector<16x16xf32> to vector<16x16xbf16>
    %cst_25 = arith.constant dense<0.000000e+00> : vector<16x8xf32>
    %64 = tpu.matmul %63, %54, %cst_25 {dimension_numbers = #tpu.dot_dimension_numbers<[1], [0], [0], [1], [0, 0, 1, 1], [], []>} : vector<16x16xbf16>, vector<16x8xbf16>, vector<16x8xf32> -> vector<16x8xf32>
    %65 = tpu.reciprocal %62 : vector<16x1xf32> -> vector<16x1xf32>
    %66 = vector.broadcast %65 : vector<16x1xf32> to vector<16x8xf32>
    %67 = arith.mulf %64, %66 : vector<16x8xf32>
    %68 = arith.truncf %67 : vector<16x8xf32> to vector<16x8xbf16>
    %69 = vector.extract_strided_slice %34 {offsets = [0, 16], sizes = [16, 8], strides = [1, 1]} : vector<16x32xbf16> to vector<16x8xbf16>
    %70 = vector.extract_strided_slice %20 {offsets = [0, 16], sizes = [16, 8], strides = [1, 1]} : vector<16x32xbf16> to vector<16x8xbf16>
    %71 = vector.extract_strided_slice %21 {offsets = [0, 16], sizes = [16, 8], strides = [1, 1]} : vector<16x32xbf16> to vector<16x8xbf16>
    %cst_26 = arith.constant dense<0.000000e+00> : vector<16x16xf32>
    %72 = tpu.matmul %69, %70, %cst_26 {dimension_numbers = #tpu.dot_dimension_numbers<[1], [1], [0], [0], [0, 0, 1, 0], [], []>} : vector<16x8xbf16>, vector<16x8xbf16>, vector<16x16xf32> -> vector<16x16xf32>
    %cst_27 = arith.constant dense<0xFF800000> : vector<16xf32>
    %73 = vector.multi_reduction <maximumf>, %72, %cst_27 [1] : vector<16x16xf32> to vector<16xf32>
    %74 = vector.shape_cast %73 : vector<16xf32> to vector<16x1xf32>
    %75 = vector.broadcast %74 : vector<16x1xf32> to vector<16x16xf32>
    %76 = arith.subf %72, %75 : vector<16x16xf32>
    %77 = math.exp %76 : vector<16x16xf32>
    %cst_28 = arith.constant dense<0.000000e+00> : vector<16xf32>
    %78 = vector.multi_reduction <add>, %77, %cst_28 [1] : vector<16x16xf32> to vector<16xf32>
    %79 = vector.shape_cast %78 : vector<16xf32> to vector<16x1xf32>
    %80 = arith.truncf %77 : vector<16x16xf32> to vector<16x16xbf16>
    %cst_29 = arith.constant dense<0.000000e+00> : vector<16x8xf32>
    %81 = tpu.matmul %80, %71, %cst_29 {dimension_numbers = #tpu.dot_dimension_numbers<[1], [0], [0], [1], [0, 0, 1, 1], [], []>} : vector<16x16xbf16>, vector<16x8xbf16>, vector<16x8xf32> -> vector<16x8xf32>
    %82 = tpu.reciprocal %79 : vector<16x1xf32> -> vector<16x1xf32>
    %83 = vector.broadcast %82 : vector<16x1xf32> to vector<16x8xf32>
    %84 = arith.mulf %81, %83 : vector<16x8xf32>
    %85 = arith.truncf %84 : vector<16x8xf32> to vector<16x8xbf16>
    %86 = vector.extract_strided_slice %34 {offsets = [0, 24], sizes = [16, 8], strides = [1, 1]} : vector<16x32xbf16> to vector<16x8xbf16>
    %87 = vector.extract_strided_slice %20 {offsets = [0, 24], sizes = [16, 8], strides = [1, 1]} : vector<16x32xbf16> to vector<16x8xbf16>
    %88 = vector.extract_strided_slice %21 {offsets = [0, 24], sizes = [16, 8], strides = [1, 1]} : vector<16x32xbf16> to vector<16x8xbf16>
    %cst_30 = arith.constant dense<0.000000e+00> : vector<16x16xf32>
    %89 = tpu.matmul %86, %87, %cst_30 {dimension_numbers = #tpu.dot_dimension_numbers<[1], [1], [0], [0], [0, 0, 1, 0], [], []>} : vector<16x8xbf16>, vector<16x8xbf16>, vector<16x16xf32> -> vector<16x16xf32>
    %cst_31 = arith.constant dense<0xFF800000> : vector<16xf32>
    %90 = vector.multi_reduction <maximumf>, %89, %cst_31 [1] : vector<16x16xf32> to vector<16xf32>
    %91 = vector.shape_cast %90 : vector<16xf32> to vector<16x1xf32>
    %92 = vector.broadcast %91 : vector<16x1xf32> to vector<16x16xf32>
    %93 = arith.subf %89, %92 : vector<16x16xf32>
    %94 = math.exp %93 : vector<16x16xf32>
    %cst_32 = arith.constant dense<0.000000e+00> : vector<16xf32>
    %95 = vector.multi_reduction <add>, %94, %cst_32 [1] : vector<16x16xf32> to vector<16xf32>
    %96 = vector.shape_cast %95 : vector<16xf32> to vector<16x1xf32>
    %97 = arith.truncf %94 : vector<16x16xf32> to vector<16x16xbf16>
    %cst_33 = arith.constant dense<0.000000e+00> : vector<16x8xf32>
    %98 = tpu.matmul %97, %88, %cst_33 {dimension_numbers = #tpu.dot_dimension_numbers<[1], [0], [0], [1], [0, 0, 1, 1], [], []>} : vector<16x16xbf16>, vector<16x8xbf16>, vector<16x8xf32> -> vector<16x8xf32>
    %99 = tpu.reciprocal %96 : vector<16x1xf32> -> vector<16x1xf32>
    %100 = vector.broadcast %99 : vector<16x1xf32> to vector<16x8xf32>
    %101 = arith.mulf %98, %100 : vector<16x8xf32>
    %102 = arith.truncf %101 : vector<16x8xf32> to vector<16x8xbf16>
    %103 = tpu.concatenate %51, %68, %85, %102 in 1 : vector<16x8xbf16>, vector<16x8xbf16>, vector<16x8xbf16>, vector<16x8xbf16> -> vector<16x32xbf16>
    %104 = arith.index_cast %arg2 : i32 to index
    %c0_34 = arith.constant 0 : index
    %c0_35 = arith.constant 0 : index
    %105 = vector.load %arg7[%104, %c0_34, %c0_35] : memref<1x32x32xbf16, #tpu.memory_space<vmem>>, vector<1x32x32xbf16>
    %106 = vector.shape_cast %105 : vector<1x32x32xbf16> to vector<32x32xbf16>
    %cst_36 = arith.constant dense<0.000000e+00> : vector<16x32xf32>
    %107 = tpu.matmul %103, %106, %cst_36 {dimension_numbers = #tpu.dot_dimension_numbers<[1], [0], [0], [1], [0, 0, 1, 1], [], []>} : vector<16x32xbf16>, vector<32x32xbf16>, vector<16x32xf32> -> vector<16x32xf32>
    %c0_i32 = arith.constant 0 : i32
    %108 = arith.cmpi eq, %arg2, %c0_i32 : i32
    %109 = arith.extui %108 : i1 to i32
    %c0_i32_37 = arith.constant 0 : i32
    %110 = arith.cmpi ne, %109, %c0_i32_37 : i32
    scf.if %110 {
      %c0_40 = arith.constant 0 : index
      %c0_41 = arith.constant 0 : index
      %c0_42 = arith.constant 0 : index
      %114 = vector.load %arg9[%c0_40, %c0_41, %c0_42] : memref<1x16x32xf32, #tpu.memory_space<vmem>>, vector<1x16x32xf32>
      %115 = vector.shape_cast %114 : vector<1x16x32xf32> to vector<16x32xf32>
      %116 = vector.shape_cast %107 : vector<16x32xf32> to vector<1x16x32xf32>
      tpu.vector_store %arg9[%c0_40, %c0_41, %c0_42], %116 {strides = array<i32>} : memref<1x16x32xf32, #tpu.memory_space<vmem>>, vector<1x16x32xf32>,
    } else {
    }
    %c0_i32_38 = arith.constant 0 : i32
    %111 = arith.cmpi ne, %arg2, %c0_i32_38 : i32
    %112 = arith.extui %111 : i1 to i32
    %c0_i32_39 = arith.constant 0 : i32
    %113 = arith.cmpi ne, %112, %c0_i32_39 : i32
    scf.if %113 {
      %c0_40 = arith.constant 0 : index
      %c0_41 = arith.constant 0 : index
      %c0_42 = arith.constant 0 : index
      %114 = vector.load %arg9[%c0_40, %c0_41, %c0_42] : memref<1x16x32xf32, #tpu.memory_space<vmem>>, vector<1x16x32xf32>
      %115 = vector.shape_cast %114 : vector<1x16x32xf32> to vector<16x32xf32>
      %116 = arith.addf %115, %107 : vector<16x32xf32>
      %c0_43 = arith.constant 0 : index
      %c0_44 = arith.constant 0 : index
      %c0_45 = arith.constant 0 : index
      %117 = vector.load %arg9[%c0_43, %c0_44, %c0_45] : memref<1x16x32xf32, #tpu.memory_space<vmem>>, vector<1x16x32xf32>
      %118 = vector.shape_cast %117 : vector<1x16x32xf32> to vector<16x32xf32>
      %119 = vector.shape_cast %116 : vector<16x32xf32> to vector<1x16x32xf32>
      tpu.vector_store %arg9[%c0_43, %c0_44, %c0_45], %119 {strides = array<i32>} : memref<1x16x32xf32, #tpu.memory_space<vmem>>, vector<1x16x32xf32>,
    } else {
    }
    return
  }
  func.func @transform_0(%arg0: i32, %arg1: i32, %arg2: i32) -> (i32, i32, i32) {
    %c0_i32 = arith.constant 0 : i32
    %c0_i32_0 = arith.constant 0 : i32
    %c0_i32_1 = arith.constant 0 : i32
    return %arg0, %c0_i32, %c0_i32_0 : i32, i32, i32
  }
  func.func @transform_1(%arg0: i32, %arg1: i32, %arg2: i32) -> (i32, i32, i32) {
    %c0_i32 = arith.constant 0 : i32
    %c0_i32_0 = arith.constant 0 : i32
    %c0_i32_1 = arith.constant 0 : i32
    %c0_i32_2 = arith.constant 0 : i32
    return %c0_i32, %c0_i32_0, %c0_i32_1 : i32, i32, i32
  }
  func.func @transform_2(%arg0: i32, %arg1: i32, %arg2: i32) -> (i32, i32, i32) {
    %c0_i32 = arith.constant 0 : i32
    %c0_i32_0 = arith.constant 0 : i32
    %c0_i32_1 = arith.constant 0 : i32
    %c0_i32_2 = arith.constant 0 : i32
    return %c0_i32, %c0_i32_0, %c0_i32_1 : i32, i32, i32
  }
  func.func @transform_3(%arg0: i32, %arg1: i32, %arg2: i32) -> (i32, i32, i32) {
    %c0_i32 = arith.constant 0 : i32
    %c0_i32_0 = arith.constant 0 : i32
    %c0_i32_1 = arith.constant 0 : i32
    %c0_i32_2 = arith.constant 0 : i32
    return %c0_i32, %c0_i32_0, %c0_i32_1 : i32, i32, i32
  }
  func.func @transform_4(%arg0: i32, %arg1: i32, %arg2: i32) -> (i32, i32, i32) {
    %c0_i32 = arith.constant 0 : i32
    %c0_i32_0 = arith.constant 0 : i32
    %c0_i32_1 = arith.constant 0 : i32
    %c0_i32_2 = arith.constant 0 : i32
    return %c0_i32, %c0_i32_0, %c0_i32_1 : i32, i32, i32
  }
  func.func @transform_5(%arg0: i32, %arg1: i32, %arg2: i32) -> i32 {
    %c0_i32 = arith.constant 0 : i32
    %c0_i32_0 = arith.constant 0 : i32
    return %c0_i32 : i32
  }
  func.func @transform_6(%arg0: i32, %arg1: i32, %arg2: i32) -> (i32, i32, i32) {
    %c0_i32 = arith.constant 0 : i32
    %c0_i32_0 = arith.constant 0 : i32
    return %arg0, %arg1, %c0_i32 : i32, i32, i32
  }
}

</mosaic_0001>

<llo_original>
// kernel: tpu_custom_call.1
$region0: #{tpu_custom_call.1}
  #allocation0 [shape = 'u32[]', space=smem, size = 0x4, offset = 0x4, fixed_abs, tag = 'smem constant byte address 0x4 - core index']
  #allocation1 [shape = 'u32[144,128]{1,0:T(1,128)}', space=vmem, size = 0x12000, scoped, tag = 'internal scratch']
  #allocation2 [shape = 'f32[1]{0:T(128)S(6)}', space=smem, size = 0x200, scoped, tag = 'scoped memory for tpu_custom_call.1']
  %s0 = inlined_call_operand.hbm [shape: bf16[2,16,32], index: 0, kind: input, shape index: {}]
  %s1 = inlined_call_operand.hbm [shape: bf16[1,32,32], index: 1, kind: input, shape index: {}]
  %s2 = inlined_call_operand.hbm [shape: bf16[1,32,32], index: 2, kind: input, shape index: {}]
  %s3 = inlined_call_operand.hbm [shape: bf16[1,32,32], index: 3, kind: input, shape index: {}]
  %s4 = inlined_call_operand.hbm [shape: bf16[1,32,32], index: 4, kind: input, shape index: {}]
  %s5 = inlined_call_operand.<no memory space> [shape: f32[1], index: 5, kind: input, shape index: {}]
  %s6 = inlined_call_operand.hbm [shape: f32[2,16,32], index: 6, kind: output, shape index: {}]
  %s7 = sld [smem:[#allocation0]]
  $region85: #{tpu_custom_call.1} parent=0
    _
  %s9 = ssub.s32 1, %s7
  %s10 = scalar_select 0, %s9, %s7
  %11 = sst [smem:[#allocation2]] %s5
  $region1: #{tpu_custom_call.1} parent=0
    #allocation3 [shape = 'u8[8192]{0}', space=vmem, size = 0x2000, scoped, tag = 'input window, operand 0']
    #allocation4 [shape = 's32[2]{0}', space=sflag, size = 0x8, scoped, tag = 'scoped memory for tpu_custom_call.1']
    #allocation5 [shape = 's32[2]{0}', space=sflag, size = 0x8, scoped, tag = 'scoped memory for tpu_custom_call.1']
    #allocation6 [shape = 'u8[8192]{0}', space=vmem, size = 0x2000, scoped, tag = 'input window, operand 1, single buffered']
    #allocation7 [shape = 's32[1]{0}', space=sflag, size = 0x4, scoped, tag = 'scoped memory for tpu_custom_call.1']
    #allocation8 [shape = 'u8[8192]{0}', space=vmem, size = 0x2000, scoped, tag = 'input window, operand 2, single buffered']
    #allocation9 [shape = 'u8[8192]{0}', space=vmem, size = 0x2000, scoped, tag = 'input window, operand 3, single buffered']
    #allocation10 [shape = 's32[1]{0}', space=sflag, size = 0x4, scoped, tag = 'scoped memory for tpu_custom_call.1']
    #allocation11 [shape = 'u8[8192]{0}', space=vmem, size = 0x2000, scoped, tag = 'input window, operand 4, single buffered']
    #allocation12 [shape = 'u8[16384]{0}', space=vmem, size = 0x4000, scoped, tag = 'output window, operand 0']
    %12 = vsyncpa [#allocation4], 0
    %s13 = scalar_lea.sflag [#allocation4], 1
    %14 = vsyncpa %s13, 0
    %15 = vsyncpa [#allocation7], 0
    %16 = vsyncpa [#allocation10], 0
    %17 = vsyncpa [#allocation5], 0
    %s18 = scalar_lea.sflag [#allocation5], 1
    %19 = vsyncpa %s18, 0
    loop: start=0, step=1, limit=4
    $region2: #{tpu_custom_call.1} parent=1 // loop_pre_header
      _
    $region3: #{tpu_custom_call.1} parent=1 // loop_header
      %s21 = sphi 0, %s25
      %p22 = scmp.ge.s32.totalorder %s21, 4
      %s28 = sphi 0, %s47
      %s29 = sphi 0, %s43
      %s30 = sphi 0, %s39
      %s31 = sphi 0, %s28
      %s32 = sphi 0, %s29
      %s33 = sphi 0, %s30
      %s34 = sphi 0, %s31
      %s35 = sphi 0, %s32
      %s36 = sphi 0, %s33
      %s50 = sphi 0, %s52
      %s53 = sphi 0, %s50
      %s54 = sphi 0, %s53
      %s70 = sphi 0, %s54
      %s74 = sphi 0, %s74
      %s76 = sphi 0, %s74
      %s77 = sphi 0, %s76
      %s91 = sphi 0, %s77
      %s95 = sphi 0, %s95
      %s97 = sphi 0, %s95
      %s98 = sphi 0, %s97
      %s112 = sphi 0, %s98
      %s116 = sphi 0, %s116
      %s118 = sphi 0, %s116
      %s119 = sphi 0, %s118
      %s133 = sphi 0, %s119
      %s137 = sphi 0, %s137
      %s139 = sphi 0, %s137
      %s140 = sphi 0, %s139
      %s154 = sphi 0, %s140
      %s158 = sphi 0, %s158
      %s160 = sphi 0, %s158
      %s161 = sphi 0, %s160
      %s175 = sphi 0, %s161
      %s183 = sphi 0, %s185
      %s186 = sphi 0, %s183
      %s187 = sphi 0, %s186
      %s203 = sphi 0, %s187
    $region4: #{tpu_custom_call.1} parent=1 // loop_header_branch
      %24 = sbr.rel (%p22) target = $region8
    $region5: #{tpu_custom_call.1} parent=1 // loop_body
      %s26 = ssub.s32 %s21, 1
      %s27 = ssub.s32 %s21, 2
      %s37 = sadd.s32 1, %s30
      %p38 = scmp.ge.s32.totalorder %s37, 1
      %s39 = scalar_select %p38, 0, %s37
      %s40 = sadd.s32 1, %s29
      %s41 = scalar_select %p38, %s40, %s29
      %p42 = scmp.ge.s32.totalorder %s41, 1
      %s43 = scalar_select %p42, 0, %s41
      %s44 = sadd.s32 1, %s28
      %s45 = scalar_select %p42, %s44, %s28
      %p46 = scmp.ge.s32.totalorder %s45, 2
      %s47 = scalar_select %p46, 0, %s45
      %s48 = ssub.s32 %s28, %s47
      %p49 = scmp.eq.s32.totalorder %s48, 0
      %s51 = sadd.s32 %s50, 1
      %s52 = scalar_select %p49, %s50, %s51
      %p55 = pneg %p49
      %p56 = scmp.eq.s32.totalorder %s21, 1
      %p57 = por %p55, %p56
      %p58 = scmp.ne.s32.totalorder %s50, %s53
      %p59 = scmp.eq.s32.totalorder %s21, 0
      %p60 = por %p58, %p59
      %p61 = scmp.ne.s32.totalorder %s50, %s53
      %p62 = scmp.eq.s32.totalorder %s26, 1
      %p63 = por %p61, %p62
      %p64 = scmp.ne.s32.totalorder %s53, %s54
      %p65 = scmp.eq.s32.totalorder %s26, 0
      %p66 = por %p64, %p65
      %p67 = scmp.ne.s32.totalorder %s53, %s54
      %p68 = scmp.eq.s32.totalorder %s27, 1
      %p69 = por %p67, %p68
      %p71 = scmp.ne.s32.totalorder %s54, %s70
      %p72 = scmp.eq.s32.totalorder %s27, 0
      %p73 = por %p71, %p72
      %s75 = sadd.s32 %s74, 1
      %p78 = scmp.eq.s32.totalorder %s21, 1
      %p79 = scmp.ne.s32.totalorder %s74, %s76
      %p80 = scmp.eq.s32.totalorder %s21, 0
      %p81 = por %p79, %p80
      %p82 = scmp.ne.s32.totalorder %s74, %s76
      %p83 = scmp.eq.s32.totalorder %s26, 1
      %p84 = por %p82, %p83
      %p85 = scmp.ne.s32.totalorder %s76, %s77
      %p86 = scmp.eq.s32.totalorder %s26, 0
      %p87 = por %p85, %p86
      %p88 = scmp.ne.s32.totalorder %s76, %s77
      %p89 = scmp.eq.s32.totalorder %s27, 1
      %p90 = por %p88, %p89
      %p92 = scmp.ne.s32.totalorder %s77, %s91
      %p93 = scmp.eq.s32.totalorder %s27, 0
      %p94 = por %p92, %p93
      %s96 = sadd.s32 %s95, 1
      %p99 = scmp.eq.s32.totalorder %s21, 1
      %p100 = scmp.ne.s32.totalorder %s95, %s97
      %p101 = scmp.eq.s32.totalorder %s21, 0
      %p102 = por %p100, %p101
      %p103 = scmp.ne.s32.totalorder %s95, %s97
      %p104 = scmp.eq.s32.totalorder %s26, 1
      %p105 = por %p103, %p104
      %p106 = scmp.ne.s32.totalorder %s97, %s98
      %p107 = scmp.eq.s32.totalorder %s26, 0
      %p108 = por %p106, %p107
      %p109 = scmp.ne.s32.totalorder %s97, %s98
      %p110 = scmp.eq.s32.totalorder %s27, 1
      %p111 = por %p109, %p110
      %p113 = scmp.ne.s32.totalorder %s98, %s112
      %p114 = scmp.eq.s32.totalorder %s27, 0
      %p115 = por %p113, %p114
      %s117 = sadd.s32 %s116, 1
      %p120 = scmp.eq.s32.totalorder %s21, 1
      %p121 = scmp.ne.s32.totalorder %s116, %s118
      %p122 = scmp.eq.s32.totalorder %s21, 0
      %p123 = por %p121, %p122
      %p124 = scmp.ne.s32.totalorder %s116, %s118
      %p125 = scmp.eq.s32.totalorder %s26, 1
      %p126 = por %p124, %p125
      %p127 = scmp.ne.s32.totalorder %s118, %s119
      %p128 = scmp.eq.s32.totalorder %s26, 0
      %p129 = por %p127, %p128
      %p130 = scmp.ne.s32.totalorder %s118, %s119
      %p131 = scmp.eq.s32.totalorder %s27, 1
      %p132 = por %p130, %p131
      %p134 = scmp.ne.s32.totalorder %s119, %s133
      %p135 = scmp.eq.s32.totalorder %s27, 0
      %p136 = por %p134, %p135
      %s138 = sadd.s32 %s137, 1
      %p141 = scmp.eq.s32.totalorder %s21, 1
      %p142 = scmp.ne.s32.totalorder %s137, %s139
      %p143 = scmp.eq.s32.totalorder %s21, 0
      %p144 = por %p142, %p143
      %p145 = scmp.ne.s32.totalorder %s137, %s139
      %p146 = scmp.eq.s32.totalorder %s26, 1
      %p147 = por %p145, %p146
      %p148 = scmp.ne.s32.totalorder %s139, %s140
      %p149 = scmp.eq.s32.totalorder %s26, 0
      %p150 = por %p148, %p149
      %p151 = scmp.ne.s32.totalorder %s139, %s140
      %p152 = scmp.eq.s32.totalorder %s27, 1
      %p153 = por %p151, %p152
      %p155 = scmp.ne.s32.totalorder %s140, %s154
      %p156 = scmp.eq.s32.totalorder %s27, 0
      %p157 = por %p155, %p156
      %s159 = sadd.s32 %s158, 1
      %p162 = scmp.eq.s32.totalorder %s21, 1
      %p163 = scmp.ne.s32.totalorder %s158, %s160
      %p164 = scmp.eq.s32.totalorder %s21, 0
      %p165 = por %p163, %p164
      %p166 = scmp.ne.s32.totalorder %s158, %s160
      %p167 = scmp.eq.s32.totalorder %s26, 1
      %p168 = por %p166, %p167
      %p169 = scmp.ne.s32.totalorder %s160, %s161
      %p170 = scmp.eq.s32.totalorder %s26, 0
      %p171 = por %p169, %p170
      %p172 = scmp.ne.s32.totalorder %s160, %s161
      %p173 = scmp.eq.s32.totalorder %s27, 1
      %p174 = por %p172, %p173
      %p176 = scmp.ne.s32.totalorder %s161, %s175
      %p177 = scmp.eq.s32.totalorder %s27, 0
      %p178 = por %p176, %p177
      %s179 = ssub.s32 %s28, %s47
      %s180 = ssub.s32 %s29, %s43
      %s181 = sor.u32 %s179, %s180
      %p182 = scmp.eq.s32.totalorder %s181, 0
      %s184 = sadd.s32 %s183, 1
      %s185 = scalar_select %p182, %s183, %s184
      %p188 = pneg %p182
      %p189 = scmp.eq.s32.totalorder %s21, 1
      %p190 = por %p188, %p189
      %p191 = scmp.ne.s32.totalorder %s183, %s186
      %p192 = scmp.eq.s32.totalorder %s21, 0
      %p193 = por %p191, %p192
      %p194 = scmp.ne.s32.totalorder %s183, %s186
      %p195 = scmp.eq.s32.totalorder %s26, 1
      %p196 = por %p194, %p195
      %p197 = scmp.ne.s32.totalorder %s186, %s187
      %p198 = scmp.eq.s32.totalorder %s26, 0
      %p199 = por %p197, %p198
      %p200 = scmp.ne.s32.totalorder %s186, %s187
      %p201 = scmp.eq.s32.totalorder %s27, 1
      %p202 = por %p200, %p201
      %p204 = scmp.ne.s32.totalorder %s187, %s203
      %p205 = scmp.eq.s32.totalorder %s27, 0
      %p206 = por %p204, %p205
      %p207 = scmp.le.s32.totalorder 1, %s21
      %p208 = scmp.lt.s32.totalorder %s21, 3
      %p209 = pnand %p207, %p208
      %p210 = pneg %p209
      // Predicated region
      $region9: #{tpu_custom_call.1} parent=5 // pred_check
        _
      $region10: #{tpu_custom_call.1} parent=5 // pred_check_branch
        %212 = sbr.rel (%p209) target = $region12
      $region11: #{tpu_custom_call.1} parent=5 // pred_region
        %s213 = ssub.s32 %s21, 1
        // Predicated region
        $region13: #{tpu_custom_call.1} parent=11 // pred_check
          %p214 = pneg %p87
        $region14: #{tpu_custom_call.1} parent=11 // pred_check_branch
          %216 = sbr.rel (%p214) target = $region16
        $region15: #{tpu_custom_call.1} parent=11 // pred_region
          %s218 = ssub.s32 256, 256
          %219 = vsyncadd [#allocation7], %s218
          %s220 = sshll.u32 [#allocation6], 4
          %s221 = int_to_ptr.vmem [resolvable:$true] %s220
          %226 = dma.hbm_to_vmem [thread:$0]  %s1, 256, %s221, [#allocation7], 64, 64, 4
        $region16: #{tpu_custom_call.1} parent=11 // pred_fallthru
          _
        // Predicated region
        $region17: #{tpu_custom_call.1} parent=11 // pred_check
          %p227 = pneg %p108
        $region18: #{tpu_custom_call.1} parent=11 // pred_check_branch
          %229 = sbr.rel (%p227) target = $region20
        $region19: #{tpu_custom_call.1} parent=11 // pred_region
          %s231 = ssub.s32 256, 256
          %232 = vsyncadd [#allocation7], %s231
          %s233 = sshll.u32 [#allocation8], 4
          %s234 = int_to_ptr.vmem [resolvable:$true] %s233
          %239 = dma.hbm_to_vmem [thread:$0]  %s2, 256, %s234, [#allocation7], 64, 64, 4
        $region20: #{tpu_custom_call.1} parent=11 // pred_fallthru
          _
        // Predicated region
        $region21: #{tpu_custom_call.1} parent=11 // pred_check
          %p240 = pneg %p129
        $region22: #{tpu_custom_call.1} parent=11 // pred_check_branch
          %242 = sbr.rel (%p240) target = $region24
        $region23: #{tpu_custom_call.1} parent=11 // pred_region
          %s244 = ssub.s32 256, 256
          %245 = vsyncadd [#allocation10], %s244
          %s246 = sshll.u32 [#allocation9], 4
          %s247 = int_to_ptr.vmem [resolvable:$true] %s246
          %252 = dma.hbm_to_vmem [thread:$0]  %s3, 256, %s247, [#allocation10], 64, 64, 4
        $region24: #{tpu_custom_call.1} parent=11 // pred_fallthru
          _
        // Predicated region
        $region25: #{tpu_custom_call.1} parent=11 // pred_check
          %p253 = pneg %p150
        $region26: #{tpu_custom_call.1} parent=11 // pred_check_branch
          %255 = sbr.rel (%p253) target = $region28
        $region27: #{tpu_custom_call.1} parent=11 // pred_region
          %s257 = ssub.s32 256, 256
          %258 = vsyncadd [#allocation10], %s257
          %s259 = sshll.u32 [#allocation11], 4
          %s260 = int_to_ptr.vmem [resolvable:$true] %s259
          %265 = dma.hbm_to_vmem [thread:$0]  %s4, 256, %s260, [#allocation10], 64, 64, 4
        $region28: #{tpu_custom_call.1} parent=11 // pred_fallthru
          _
        // Predicated region
        $region29: #{tpu_custom_call.1} parent=11 // pred_check
          %p266 = pneg %p171
        $region30: #{tpu_custom_call.1} parent=11 // pred_check_branch
          %268 = sbr.rel (%p266) target = $region32
        $region31: #{tpu_custom_call.1} parent=11 // pred_region
          _
        $region32: #{tpu_custom_call.1} parent=11 // pred_fallthru
          _
      $region12: #{tpu_custom_call.1} parent=5 // pred_fallthru
        _
      %p269 = scmp.lt.s32.totalorder %s21, 2
      // Predicated region
      $region33: #{tpu_custom_call.1} parent=5 // pred_check
        %p270 = pneg %p269
      $region34: #{tpu_custom_call.1} parent=5 // pred_check_branch
        %272 = sbr.rel (%p270) target = $region36
      $region35: #{tpu_custom_call.1} parent=5 // pred_region
        // Predicated region
        $region37: #{tpu_custom_call.1} parent=35 // pred_check
          %p273 = pneg %p60
        $region38: #{tpu_custom_call.1} parent=35 // pred_check_branch
          %275 = sbr.rel (%p273) target = $region40
        $region39: #{tpu_custom_call.1} parent=35 // pred_region
          %s276 = sand.u32 %s50, 1
          %s277 = scalar_lea.sflag [#allocation4], %s276
          %s278 = sand.u32 %s50, 1
          %s279 = smul.addr %s278, 8
          %s280 = scalar_lea.vmem [#allocation3], %s279
          %s282 = ssub.s32 128, 128
          %283 = vsyncadd %s277, %s282
          %s284 = smul.addr %s28, 2
          %s285 = smul.addr %s284, 64
          %s286 = scalar_lea.hbm %s0, %s285
          %s287 = sshll.u32 %s280, 4
          %s288 = int_to_ptr.vmem [resolvable:$true] %s287
          %293 = dma.hbm_to_vmem [thread:$0]  %s286, 128, %s288, %s277, 64, 64, 4
        $region40: #{tpu_custom_call.1} parent=35 // pred_fallthru
          _
      $region36: #{tpu_custom_call.1} parent=5 // pred_fallthru
        _
      %p294 = scmp.le.s32.totalorder 1, %s21
      %p295 = scmp.lt.s32.totalorder %s21, 3
      %p296 = pnand %p294, %p295
      %p297 = pneg %p296
      // Predicated region
      $region41: #{tpu_custom_call.1} parent=5 // pred_check
        _
      $region42: #{tpu_custom_call.1} parent=5 // pred_check_branch
        %299 = sbr.rel (%p296) target = $region44
      $region43: #{tpu_custom_call.1} parent=5 // pred_region
        %s300 = ssub.s32 %s21, 1
        %s301 = sand.u32 %s53, 1
        %s302 = scalar_lea.sflag [#allocation4], %s301
        %s303 = sand.u32 %s53, 1
        %s304 = smul.addr %s303, 8
        %s305 = scalar_lea.vmem [#allocation3], %s304
        // Predicated region
        $region45: #{tpu_custom_call.1} parent=43 // pred_check
          %p306 = pneg %p66
        $region46: #{tpu_custom_call.1} parent=43 // pred_check_branch
          %308 = sbr.rel (%p306) target = $region48
        $region47: #{tpu_custom_call.1} parent=43 // pred_region
          %309 = dma.done %s302, 128
        $region48: #{tpu_custom_call.1} parent=43 // pred_fallthru
          _
        // Predicated region
        $region49: #{tpu_custom_call.1} parent=43 // pred_check
          %p310 = pneg %p87
        $region50: #{tpu_custom_call.1} parent=43 // pred_check_branch
          %312 = sbr.rel (%p310) target = $region52
        $region51: #{tpu_custom_call.1} parent=43 // pred_region
          %313 = dma.done [#allocation7], 256
        $region52: #{tpu_custom_call.1} parent=43 // pred_fallthru
          _
        // Predicated region
        $region53: #{tpu_custom_call.1} parent=43 // pred_check
          %p314 = pneg %p108
        $region54: #{tpu_custom_call.1} parent=43 // pred_check_branch
          %316 = sbr.rel (%p314) target = $region56
        $region55: #{tpu_custom_call.1} parent=43 // pred_region
          %317 = dma.done [#allocation7], 256
        $region56: #{tpu_custom_call.1} parent=43 // pred_fallthru
          _
        // Predicated region
        $region57: #{tpu_custom_call.1} parent=43 // pred_check
          %p318 = pneg %p129
        $region58: #{tpu_custom_call.1} parent=43 // pred_check_branch
          %320 = sbr.rel (%p318) target = $region60
        $region59: #{tpu_custom_call.1} parent=43 // pred_region
          %321 = dma.done [#allocation10], 256
        $region60: #{tpu_custom_call.1} parent=43 // pred_fallthru
          _
        // Predicated region
        $region61: #{tpu_custom_call.1} parent=43 // pred_check
          %p322 = pneg %p150
        $region62: #{tpu_custom_call.1} parent=43 // pred_check_branch
          %324 = sbr.rel (%p322) target = $region64
        $region63: #{tpu_custom_call.1} parent=43 // pred_region
          %325 = dma.done [#allocation10], 256
        $region64: #{tpu_custom_call.1} parent=43 // pred_fallthru
          _
        %s326 = sand.u32 %s53, 1
        %s327 = scalar_lea.sflag [#allocation4], %s326
        %s328 = sand.u32 %s53, 1
        %s329 = smul.addr %s328, 8
        %s330 = scalar_lea.vmem [#allocation3], %s329
        %p331 = pneg %p66
        %p332 = pneg %p63
        %p333 = pneg %p87
        %p334 = pneg %p84
        %p335 = pneg %p108
        %p336 = pneg %p105
        %p337 = pneg %p129
        %p338 = pneg %p126
        %p339 = pneg %p150
        %p340 = pneg %p147
        %p341 = pneg %p171
        %p342 = pneg %p168
        %p343 = pneg %p199
        %p344 = pneg %p196
        %s345 = sand.u32 %s186, 1
        %s346 = scalar_lea.sflag [#allocation5], %s345
        %s347 = sand.u32 %s186, 1
        %s348 = smul.addr %s347, 16
        %s349 = scalar_lea.vmem [#allocation12], %s348
        %s350 = smul.u32 2, %s32
        %v352 = vld [vmem:[%s305] sm:$0xf]
        %v353 = vld [vmem:[%s305 + $0x4] sm:$0xf]
        %s354 = sld [smem:[#allocation2]]
        %s355 = smul.u32 %s33, 4
        %s356 = smul.addr %s355, 4
        %s357 = scalar_lea.vmem [#allocation8], %s356
        %v358 = vld [vmem:[%s357] sm:$0xf]
        %v359 = vld [vmem:[%s357 + $0x4] sm:$0xf]
        %v360 = vld [vmem:[%s357 + $0x8] sm:$0xf]
        %v361 = vld [vmem:[%s357 + $0xc] sm:$0xf]
        %v364 = vunpack.c.l.b16 %v352
        %v365 = vunpack.c.l.b16 %v353
        %v366 = vpack.c.b16 %v365, %v364
        %v371 = vunpack.c.l.b16 %v358
        %v372 = vunpack.c.l.b16 %v359
        %v373 = vunpack.c.l.b16 %v360
        %v374 = vunpack.c.l.b16 %v361
        %v375 = vpack.c.b16 %v372, %v371
        %v376 = vpack.c.b16 %v374, %v373
        %vm379 = vcmask 261120
        %v381 = vsel %vm379, %v366, 0
        %383 = vmatprep.subr.bf16.mxu0 0
        %384 = vmatpush1.bf16.msra.mxu0 %v375
        %385 = vmatprep.subr.bf16.mxu0 0
        %386 = vmatpush1.bf16.msra.mxu0 %v376
        %387 = vmatprep.subr.bf16.mxu0 0
        %388 = vmatpush1.bf16.msra.mxu0 0
        %389 = vmatprep.subr.bf16.mxu0 0
        %390 = vmatpush1.bf16.msra.mxu0 0
        %391 = vmatprep.subr.bf16.mxu0 0
        %392 = vmatpush1.bf16.msra.mxu0 0
        %393 = vmatprep.subr.bf16.mxu0 0
        %394 = vmatpush1.bf16.msra.mxu0 0
        %395 = vmatprep.subr.bf16.mxu0 0
        %396 = vmatpush1.bf16.msra.mxu0 0
        %397 = vmatprep.subr.bf16.mxu0 0
        %398 = vmatpush1.bf16.msra.mxu0 0
        %399 = vmatprep.subr.bf16.mxu0 0
        %400 = vmatpush1.bf16.msra.mxu0 0
        %401 = vmatprep.subr.bf16.mxu0 0
        %402 = vmatpush1.bf16.msra.mxu0 0
        %403 = vmatprep.subr.bf16.mxu0 0
        %404 = vmatpush1.bf16.msra.mxu0 0
        %405 = vmatprep.subr.bf16.mxu0 0
        %406 = vmatpush1.bf16.msra.mxu0 0
        %407 = vmatprep.subr.bf16.mxu0 0
        %408 = vmatpush1.bf16.msra.mxu0 0
        %409 = vmatprep.subr.bf16.mxu0 0
        %410 = vmatpush1.bf16.msra.mxu0 0
        %411 = vmatprep.subr.bf16.mxu0 0
        %412 = vmatpush1.bf16.msra.mxu0 0
        %413 = vmatprep.subr.bf16.mxu0 0
        %414 = vmatpush1.bf16.msra.mxu0 0
        %415 = vmatprep.mubr.bf16.mxu0 0
        %416 = vmatmul.mubr.bf16.gmra.mrb[0].mxu0 %v381
        %v417 = vpop.f32.mrb[0].mxu0
        %v418 = vadd.f32 0.0, %v417
        %v419 = vpop.f32.mrb[0].mxu0
        %v420 = vpop.f32.mrb[0].mxu0
        %v421 = vadd.f32 0.0, %v420
        %v422 = vpop.f32.mrb[0].mxu0
        %423 = vdwg.mxu0
        %s424 = smul.addr %s355, 4
        %s425 = scalar_lea.vmem [#allocation9], %s424
        %v426 = vld [vmem:[%s425] sm:$0xf]
        %v427 = vld [vmem:[%s425 + $0x4] sm:$0xf]
        %v428 = vld [vmem:[%s425 + $0x8] sm:$0xf]
        %v429 = vld [vmem:[%s425 + $0xc] sm:$0xf]
        %v434 = vunpack.c.l.b16 %v426
        %v435 = vunpack.c.l.b16 %v427
        %v436 = vunpack.c.l.b16 %v428
        %v437 = vunpack.c.l.b16 %v429
        %v438 = vpack.c.b16 %v435, %v434
        %v439 = vpack.c.b16 %v437, %v436
        %442 = vmatprep.subr.bf16.mxu0 0
        %443 = vmatpush1.bf16.msra.mxu0 %v438
        %444 = vmatprep.subr.bf16.mxu0 0
        %445 = vmatpush1.bf16.msra.mxu0 %v439
        %446 = vmatprep.subr.bf16.mxu0 0
        %447 = vmatpush1.bf16.msra.mxu0 0
        %448 = vmatprep.subr.bf16.mxu0 0
        %449 = vmatpush1.bf16.msra.mxu0 0
        %450 = vmatprep.subr.bf16.mxu0 0
        %451 = vmatpush1.bf16.msra.mxu0 0
        %452 = vmatprep.subr.bf16.mxu0 0
        %453 = vmatpush1.bf16.msra.mxu0 0
        %454 = vmatprep.subr.bf16.mxu0 0
        %455 = vmatpush1.bf16.msra.mxu0 0
        %456 = vmatprep.subr.bf16.mxu0 0
        %457 = vmatpush1.bf16.msra.mxu0 0
        %458 = vmatprep.subr.bf16.mxu0 0
        %459 = vmatpush1.bf16.msra.mxu0 0
        %460 = vmatprep.subr.bf16.mxu0 0
        %461 = vmatpush1.bf16.msra.mxu0 0
        %462 = vmatprep.subr.bf16.mxu0 0
        %463 = vmatpush1.bf16.msra.mxu0 0
        %464 = vmatprep.subr.bf16.mxu0 0
        %465 = vmatpush1.bf16.msra.mxu0 0
        %466 = vmatprep.subr.bf16.mxu0 0
        %467 = vmatpush1.bf16.msra.mxu0 0
        %468 = vmatprep.subr.bf16.mxu0 0
        %469 = vmatpush1.bf16.msra.mxu0 0
        %470 = vmatprep.subr.bf16.mxu0 0
        %471 = vmatpush1.bf16.msra.mxu0 0
        %472 = vmatprep.subr.bf16.mxu0 0
        %473 = vmatpush1.bf16.msra.mxu0 0
        %474 = vmatprep.mubr.bf16.mxu0 0
        %475 = vmatmul.mubr.bf16.gmra.mrb[0].mxu0 %v381
        %v476 = vpop.f32.mrb[0].mxu0
        %v477 = vadd.f32 0.0, %v476
        %v478 = vpop.f32.mrb[0].mxu0
        %v479 = vpop.f32.mrb[0].mxu0
        %v480 = vadd.f32 0.0, %v479
        %v481 = vpop.f32.mrb[0].mxu0
        %482 = vdwg.mxu0
        %v483 = vand.u32 2147483647, %v418
        %vm484 = vcmp.le.f32.partialorder %v483, 0.7853982
        %vm485 = vcmp.lt.s32.totalorder %v418, 0
        %v486 = vand.u32 %v418, 2139095040
        %v487 = vshrl.u32 %v486, 23
        %v488 = vsub.s32 %v487, 127
        %v489 = vand.u32 2147483647, %v418
        %v490 = vand.u32 %v489, 8388607
        %v491 = vor.u32 %v490, 8388608
        %v492 = vsub.s32 0, %v491
        %v493 = vadd.s32 %v488, 1
        %vm494 = vcmp.gt.s32.totalorder %v493, 0
        %v495 = vsel %vm494, %v493, 0
        %v496 = vshrl.u32 %v495, 5
        %v497 = vand.u32 %v495, 31
        %v498 = vsub.s32 32, %v497
        %v499 = vshrl.u32 683565275, %v498
        %v500 = vshll.u32 683565275, %v497
        %v501 = vshrl.u32 2475754826, %v498
        %v502 = vor.u32 %v500, %v501
        %v503 = vshll.u32 2475754826, %v497
        %v504 = vshrl.u32 2131351028, %v498
        %v505 = vor.u32 %v503, %v504
        %v506 = vshll.u32 2131351028, %v497
        %v507 = vshrl.u32 2102212464, %v498
        %v508 = vor.u32 %v506, %v507
        %v509 = vshll.u32 2102212464, %v497
        %v510 = vshrl.u32 920167782, %v498
        %v511 = vor.u32 %v509, %v510
        %v512 = vshll.u32 920167782, %v497
        %v513 = vshrl.u32 1326507024, %v498
        %v514 = vor.u32 %v512, %v513
        %vm515 = vcmp.lt.s32.totalorder %v496, 1
        %vm516 = vcmp.lt.s32.totalorder %v496, 2
        %vm517 = vcmp.lt.s32.totalorder %v496, 3
        %vm518 = vcmp.lt.s32.totalorder %v496, 4
        %v519 = vsel %vm515, %v499, %v502
        %v520 = vsel %vm518, %v508, 2102212464
        %v521 = vsel %vm517, %v505, %v520
        %v522 = vsel %vm516, %v519, %v521
        %v523 = vsel %vm515, %v502, %v505
        %v524 = vsel %vm518, %v511, 920167782
        %v525 = vsel %vm517, %v508, %v524
        %v526 = vsel %vm516, %v523, %v525
        %v527 = vsel %vm515, %v505, %v508
        %v528 = vsel %vm518, %v514, 1326507024
        %v529 = vsel %vm517, %v511, %v528
        %v530 = vsel %vm516, %v527, %v529
        %v531 = vshll.u32 %v491, 8
        %v532 = vmul.u32.u64.compose %v531, %v530
        %v533 = vextract.low.u32 %v532
        %v534 = vextract.high.u32 %v532
        %v535 = vmul.u32.u64.compose %v531, %v526
        %v536 = vextract.low.u32 %v535
        %v537 = vextract.high.u32 %v535
        %v538 = vmul.u32 %v531, %v522
        %v539 = vadd.s32 %v534, %v536
        %vm540 = vc.u32 %v534, %v536
        %v541 = vadd.s32 %v537, 1
        %v542 = vsel %vm540, %v541, %v537
        %v543 = vadd.s32 %v538, %v542
        %v544 = vadd.s32 %v543, 536870912
        %v545 = vshrl.u32 %v544, 30
        %v546 = vshll.u32 %v545, 30
        %v547 = vsub.s32 %v543, %v546
        %vm548 = vcmp.lt.s32.totalorder %v547, 0
        %v549 = vsub.s32 0, %v547
        %v550 = vsel %vm548, %v549, %v547
        %v551 = vclz %v550
        %v552 = vsub.s32 %v551, 2
        %vm553 = vcmp.gt.s32.totalorder 0, %v552
        %v554 = vsel %vm553, 0, %v552
        %v555 = vsub.s32 32, %v554
        %v556 = vshll.u32 %v547, %v554
        %v557 = vshrl.u32 %v539, %v555
        %v558 = vor.u32 %v556, %v557
        %v559 = vsub.s32 4294967266, %v554
        %v560 = vadd.s32 %v559, 127
        %v561 = vshll.u32 %v560, 23
        %v562 = vor.u32 4788187, %v561
        %v563 = vand.u32 2147483647, %v562
        %v565 = vcvt.s32.f32 %v558
        %v566 = vmul.f32 %v565, %v563
        %v567 = vxor.u32 %v566, 2147483648
        %v568 = vsel %vm485, %v567, %v566
        %v569 = vsub.s32 4, %v545
        %v570 = vsel %vm485, %v569, %v545
        %v571 = vsel %vm484, %v418, %v568
        %v572 = vsel %vm484, 0, %v570
        %v573 = vcosq.f32.pop %v571
        %v574 = vsinq.f32.pop %v571
        %vm575 = vweird.f32 %v418
        %v576 = vand.u32 %v572, 3
        %vm577 = vcmp.lt.s32.totalorder %v576, 2
        %vm578 = vcmp.eq.s32.totalorder %v576, 0
        %v579 = vxor.u32 %v574, 2147483648
        %v580 = vsel %vm578, %v573, %v579
        %vm581 = vcmp.eq.s32.totalorder %v576, 2
        %v582 = vxor.u32 %v573, 2147483648
        %v583 = vsel %vm581, %v582, %v574
        %v584 = vsel %vm577, %v580, %v583
        %v585 = vsel %vm575, nan, %v584
        %v586 = vand.u32 2147483647, %v421
        %vm587 = vcmp.le.f32.partialorder %v586, 0.7853982
        %vm588 = vcmp.lt.s32.totalorder %v421, 0
        %v589 = vand.u32 %v421, 2139095040
        %v590 = vshrl.u32 %v589, 23
        %v591 = vsub.s32 %v590, 127
        %v592 = vand.u32 2147483647, %v421
        %v593 = vand.u32 %v592, 8388607
        %v594 = vor.u32 %v593, 8388608
        %v595 = vsub.s32 0, %v594
        %v596 = vadd.s32 %v591, 1
        %vm597 = vcmp.gt.s32.totalorder %v596, 0
        %v598 = vsel %vm597, %v596, 0
        %v599 = vshrl.u32 %v598, 5
        %v600 = vand.u32 %v598, 31
        %v601 = vsub.s32 32, %v600
        %v602 = vshrl.u32 683565275, %v601
        %v603 = vshll.u32 683565275, %v600
        %v604 = vshrl.u32 2475754826, %v601
        %v605 = vor.u32 %v603, %v604
        %v606 = vshll.u32 2475754826, %v600
        %v607 = vshrl.u32 2131351028, %v601
        %v608 = vor.u32 %v606, %v607
        %v609 = vshll.u32 2131351028, %v600
        %v610 = vshrl.u32 2102212464, %v601
        %v611 = vor.u32 %v609, %v610
        %v612 = vshll.u32 2102212464, %v600
        %v613 = vshrl.u32 920167782, %v601
        %v614 = vor.u32 %v612, %v613
        %v615 = vshll.u32 920167782, %v600
        %v616 = vshrl.u32 1326507024, %v601
        %v617 = vor.u32 %v615, %v616
        %vm618 = vcmp.lt.s32.totalorder %v599, 1
        %vm619 = vcmp.lt.s32.totalorder %v599, 2
        %vm620 = vcmp.lt.s32.totalorder %v599, 3
        %vm621 = vcmp.lt.s32.totalorder %v599, 4
        %v622 = vsel %vm618, %v602, %v605
        %v623 = vsel %vm621, %v611, 2102212464
        %v624 = vsel %vm620, %v608, %v623
        %v625 = vsel %vm619, %v622, %v624
        %v626 = vsel %vm618, %v605, %v608
        %v627 = vsel %vm621, %v614, 920167782
        %v628 = vsel %vm620, %v611, %v627
        %v629 = vsel %vm619, %v626, %v628
        %v630 = vsel %vm618, %v608, %v611
        %v631 = vsel %vm621, %v617, 1326507024
        %v632 = vsel %vm620, %v614, %v631
        %v633 = vsel %vm619, %v630, %v632
        %v634 = vshll.u32 %v594, 8
        %v635 = vmul.u32.u64.compose %v634, %v633
        %v636 = vextract.low.u32 %v635
        %v637 = vextract.high.u32 %v635
        %v638 = vmul.u32.u64.compose %v634, %v629
        %v639 = vextract.low.u32 %v638
        %v640 = vextract.high.u32 %v638
        %v641 = vmul.u32 %v634, %v625
        %v642 = vadd.s32 %v637, %v639
        %vm643 = vc.u32 %v637, %v639
        %v644 = vadd.s32 %v640, 1
        %v645 = vsel %vm643, %v644, %v640
        %v646 = vadd.s32 %v641, %v645
        %v647 = vadd.s32 %v646, 536870912
        %v648 = vshrl.u32 %v647, 30
        %v649 = vshll.u32 %v648, 30
        %v650 = vsub.s32 %v646, %v649
        %vm651 = vcmp.lt.s32.totalorder %v650, 0
        %v652 = vsub.s32 0, %v650
        %v653 = vsel %vm651, %v652, %v650
        %v654 = vclz %v653
        %v655 = vsub.s32 %v654, 2
        %vm656 = vcmp.gt.s32.totalorder 0, %v655
        %v657 = vsel %vm656, 0, %v655
        %v658 = vsub.s32 32, %v657
        %v659 = vshll.u32 %v650, %v657
        %v660 = vshrl.u32 %v642, %v658
        %v661 = vor.u32 %v659, %v660
        %v662 = vsub.s32 4294967266, %v657
        %v663 = vadd.s32 %v662, 127
        %v664 = vshll.u32 %v663, 23
        %v665 = vor.u32 4788187, %v664
        %v666 = vand.u32 2147483647, %v665
        %v668 = vcvt.s32.f32 %v661
        %v669 = vmul.f32 %v668, %v666
        %v670 = vxor.u32 %v669, 2147483648
        %v671 = vsel %vm588, %v670, %v669
        %v672 = vsub.s32 4, %v648
        %v673 = vsel %vm588, %v672, %v648
        %v674 = vsel %vm587, %v421, %v671
        %v675 = vsel %vm587, 0, %v673
        %v676 = vcosq.f32.pop %v674
        %v677 = vsinq.f32.pop %v674
        %vm678 = vweird.f32 %v421
        %v679 = vand.u32 %v675, 3
        %vm680 = vcmp.lt.s32.totalorder %v679, 2
        %vm681 = vcmp.eq.s32.totalorder %v679, 0
        %v682 = vxor.u32 %v677, 2147483648
        %v683 = vsel %vm681, %v676, %v682
        %vm684 = vcmp.eq.s32.totalorder %v679, 2
        %v685 = vxor.u32 %v676, 2147483648
        %v686 = vsel %vm684, %v685, %v677
        %v687 = vsel %vm680, %v683, %v686
        %v688 = vsel %vm678, nan, %v687
        %v689 = vmul.f32 %v585, 0.1
        %v690 = vmul.f32 %v688, 0.1
        %v691 = vadd.f32 %v418, %v689
        %v692 = vadd.f32 %v421, %v690
        %s693 = smul.f32 %s354, 0.1
        %v694 = vtanh.pop %v477
        %v695 = vtanh.pop %v480
        %v696 = vstv %s693
        %v697 = vmul.f32 %v696, %v694
        %v698 = vmul.f32 %v696, %v695
        %v699 = vadd.f32 %v477, %v697
        %v700 = vadd.f32 %v480, %v698
        %v701 = vpack.c.bf16 %v692, %v691
        %v702 = vpack.c.bf16 %v700, %v699
        %s703 = smul.addr %s355, 4
        %s704 = scalar_lea.vmem [#allocation6], %s703
        %v705 = vld [vmem:[%s704] sm:$0xf]
        %v706 = vld [vmem:[%s704 + $0x4] sm:$0xf]
        %v707 = vld [vmem:[%s704 + $0x8] sm:$0xf]
        %v708 = vld [vmem:[%s704 + $0xc] sm:$0xf]
        %v713 = vunpack.c.l.b16 %v705
        %v714 = vunpack.c.l.b16 %v706
        %v715 = vunpack.c.l.b16 %v707
        %v716 = vunpack.c.l.b16 %v708
        %v717 = vpack.c.b16 %v714, %v713
        %v718 = vpack.c.b16 %v716, %v715
        %721 = vmatprep.subr.bf16.mxu0 0
        %722 = vmatpush1.bf16.msra.mxu0 %v717
        %723 = vmatprep.subr.bf16.mxu0 0
        %724 = vmatpush1.bf16.msra.mxu0 %v718
        %725 = vmatprep.subr.bf16.mxu0 0
        %726 = vmatpush1.bf16.msra.mxu0 0
        %727 = vmatprep.subr.bf16.mxu0 0
        %728 = vmatpush1.bf16.msra.mxu0 0
        %729 = vmatprep.subr.bf16.mxu0 0
        %730 = vmatpush1.bf16.msra.mxu0 0
        %731 = vmatprep.subr.bf16.mxu0 0
        %732 = vmatpush1.bf16.msra.mxu0 0
        %733 = vmatprep.subr.bf16.mxu0 0
        %734 = vmatpush1.bf16.msra.mxu0 0
        %735 = vmatprep.subr.bf16.mxu0 0
        %736 = vmatpush1.bf16.msra.mxu0 0
        %737 = vmatprep.subr.bf16.mxu0 0
        %738 = vmatpush1.bf16.msra.mxu0 0
        %739 = vmatprep.subr.bf16.mxu0 0
        %740 = vmatpush1.bf16.msra.mxu0 0
        %741 = vmatprep.subr.bf16.mxu0 0
        %742 = vmatpush1.bf16.msra.mxu0 0
        %743 = vmatprep.subr.bf16.mxu0 0
        %744 = vmatpush1.bf16.msra.mxu0 0
        %745 = vmatprep.subr.bf16.mxu0 0
        %746 = vmatpush1.bf16.msra.mxu0 0
        %747 = vmatprep.subr.bf16.mxu0 0
        %748 = vmatpush1.bf16.msra.mxu0 0
        %749 = vmatprep.subr.bf16.mxu0 0
        %750 = vmatpush1.bf16.msra.mxu0 0
        %751 = vmatprep.subr.bf16.mxu0 0
        %752 = vmatpush1.bf16.msra.mxu0 0
        %753 = vmatprep.mubr.bf16.mxu0 0
        %754 = vmatmul.mubr.bf16.gmra.mrb[0].mxu0 %v381
        %v755 = vpop.f32.mrb[0].mxu0
        %v756 = vadd.f32 0.0, %v755
        %v757 = vpop.f32.mrb[0].mxu0
        %v758 = vpop.f32.mrb[0].mxu0
        %v759 = vadd.f32 0.0, %v758
        %v760 = vpop.f32.mrb[0].mxu0
        %761 = vdwg.mxu0
        %v762 = vand.u32 2147483647, %v756
        %vm763 = vcmp.le.f32.partialorder %v762, 0.7853982
        %vm764 = vcmp.lt.s32.totalorder %v756, 0
        %v765 = vand.u32 %v756, 2139095040
        %v766 = vshrl.u32 %v765, 23
        %v767 = vsub.s32 %v766, 127
        %v768 = vand.u32 2147483647, %v756
        %v769 = vand.u32 %v768, 8388607
        %v770 = vor.u32 %v769, 8388608
        %v771 = vsub.s32 0, %v770
        %v772 = vadd.s32 %v767, 1
        %vm773 = vcmp.gt.s32.totalorder %v772, 0
        %v774 = vsel %vm773, %v772, 0
        %v775 = vshrl.u32 %v774, 5
        %v776 = vand.u32 %v774, 31
        %v777 = vsub.s32 32, %v776
        %v778 = vshrl.u32 683565275, %v777
        %v779 = vshll.u32 683565275, %v776
        %v780 = vshrl.u32 2475754826, %v777
        %v781 = vor.u32 %v779, %v780
        %v782 = vshll.u32 2475754826, %v776
        %v783 = vshrl.u32 2131351028, %v777
        %v784 = vor.u32 %v782, %v783
        %v785 = vshll.u32 2131351028, %v776
        %v786 = vshrl.u32 2102212464, %v777
        %v787 = vor.u32 %v785, %v786
        %v788 = vshll.u32 2102212464, %v776
        %v789 = vshrl.u32 920167782, %v777
        %v790 = vor.u32 %v788, %v789
        %v791 = vshll.u32 920167782, %v776
        %v792 = vshrl.u32 1326507024, %v777
        %v793 = vor.u32 %v791, %v792
        %vm794 = vcmp.lt.s32.totalorder %v775, 1
        %vm795 = vcmp.lt.s32.totalorder %v775, 2
        %vm796 = vcmp.lt.s32.totalorder %v775, 3
        %vm797 = vcmp.lt.s32.totalorder %v775, 4
        %v798 = vsel %vm794, %v778, %v781
        %v799 = vsel %vm797, %v787, 2102212464
        %v800 = vsel %vm796, %v784, %v799
        %v801 = vsel %vm795, %v798, %v800
        %v802 = vsel %vm794, %v781, %v784
        %v803 = vsel %vm797, %v790, 920167782
        %v804 = vsel %vm796, %v787, %v803
        %v805 = vsel %vm795, %v802, %v804
        %v806 = vsel %vm794, %v784, %v787
        %v807 = vsel %vm797, %v793, 1326507024
        %v808 = vsel %vm796, %v790, %v807
        %v809 = vsel %vm795, %v806, %v808
        %v810 = vshll.u32 %v770, 8
        %v811 = vmul.u32.u64.compose %v810, %v809
        %v812 = vextract.low.u32 %v811
        %v813 = vextract.high.u32 %v811
        %v814 = vmul.u32.u64.compose %v810, %v805
        %v815 = vextract.low.u32 %v814
        %v816 = vextract.high.u32 %v814
        %v817 = vmul.u32 %v810, %v801
        %v818 = vadd.s32 %v813, %v815
        %vm819 = vc.u32 %v813, %v815
        %v820 = vadd.s32 %v816, 1
        %v821 = vsel %vm819, %v820, %v816
        %v822 = vadd.s32 %v817, %v821
        %v823 = vadd.s32 %v822, 536870912
        %v824 = vshrl.u32 %v823, 30
        %v825 = vshll.u32 %v824, 30
        %v826 = vsub.s32 %v822, %v825
        %vm827 = vcmp.lt.s32.totalorder %v826, 0
        %v828 = vsub.s32 0, %v826
        %v829 = vsel %vm827, %v828, %v826
        %v830 = vclz %v829
        %v831 = vsub.s32 %v830, 2
        %vm832 = vcmp.gt.s32.totalorder 0, %v831
        %v833 = vsel %vm832, 0, %v831
        %v834 = vsub.s32 32, %v833
        %v835 = vshll.u32 %v826, %v833
        %v836 = vshrl.u32 %v818, %v834
        %v837 = vor.u32 %v835, %v836
        %v838 = vsub.s32 4294967266, %v833
        %v839 = vadd.s32 %v838, 127
        %v840 = vshll.u32 %v839, 23
        %v841 = vor.u32 4788187, %v840
        %v842 = vand.u32 2147483647, %v841
        %v844 = vcvt.s32.f32 %v837
        %v845 = vmul.f32 %v844, %v842
        %v846 = vxor.u32 %v845, 2147483648
        %v847 = vsel %vm764, %v846, %v845
        %v848 = vsub.s32 4, %v824
        %v849 = vsel %vm764, %v848, %v824
        %v850 = vsel %vm763, %v756, %v847
        %v851 = vsel %vm763, 0, %v849
        %v852 = vcosq.f32.pop %v850
        %v853 = vsinq.f32.pop %v850
        %vm854 = vweird.f32 %v756
        %v855 = vadd.s32 %v851, 3
        %v856 = vand.u32 %v855, 3
        %vm857 = vcmp.lt.s32.totalorder %v856, 2
        %vm858 = vcmp.eq.s32.totalorder %v856, 0
        %v859 = vxor.u32 %v853, 2147483648
        %v860 = vsel %vm858, %v852, %v859
        %vm861 = vcmp.eq.s32.totalorder %v856, 2
        %v862 = vxor.u32 %v852, 2147483648
        %v863 = vsel %vm861, %v862, %v853
        %v864 = vsel %vm857, %v860, %v863
        %v865 = vsel %vm854, nan, %v864
        %v866 = vand.u32 2147483647, %v759
        %vm867 = vcmp.le.f32.partialorder %v866, 0.7853982
        %vm868 = vcmp.lt.s32.totalorder %v759, 0
        %v869 = vand.u32 %v759, 2139095040
        %v870 = vshrl.u32 %v869, 23
        %v871 = vsub.s32 %v870, 127
        %v872 = vand.u32 2147483647, %v759
        %v873 = vand.u32 %v872, 8388607
        %v874 = vor.u32 %v873, 8388608
        %v875 = vsub.s32 0, %v874
        %v876 = vadd.s32 %v871, 1
        %vm877 = vcmp.gt.s32.totalorder %v876, 0
        %v878 = vsel %vm877, %v876, 0
        %v879 = vshrl.u32 %v878, 5
        %v880 = vand.u32 %v878, 31
        %v881 = vsub.s32 32, %v880
        %v882 = vshrl.u32 683565275, %v881
        %v883 = vshll.u32 683565275, %v880
        %v884 = vshrl.u32 2475754826, %v881
        %v885 = vor.u32 %v883, %v884
        %v886 = vshll.u32 2475754826, %v880
        %v887 = vshrl.u32 2131351028, %v881
        %v888 = vor.u32 %v886, %v887
        %v889 = vshll.u32 2131351028, %v880
        %v890 = vshrl.u32 2102212464, %v881
        %v891 = vor.u32 %v889, %v890
        %v892 = vshll.u32 2102212464, %v880
        %v893 = vshrl.u32 920167782, %v881
        %v894 = vor.u32 %v892, %v893
        %v895 = vshll.u32 920167782, %v880
        %v896 = vshrl.u32 1326507024, %v881
        %v897 = vor.u32 %v895, %v896
        %vm898 = vcmp.lt.s32.totalorder %v879, 1
        %vm899 = vcmp.lt.s32.totalorder %v879, 2
        %vm900 = vcmp.lt.s32.totalorder %v879, 3
        %vm901 = vcmp.lt.s32.totalorder %v879, 4
        %v902 = vsel %vm898, %v882, %v885
        %v903 = vsel %vm901, %v891, 2102212464
        %v904 = vsel %vm900, %v888, %v903
        %v905 = vsel %vm899, %v902, %v904
        %v906 = vsel %vm898, %v885, %v888
        %v907 = vsel %vm901, %v894, 920167782
        %v908 = vsel %vm900, %v891, %v907
        %v909 = vsel %vm899, %v906, %v908
        %v910 = vsel %vm898, %v888, %v891
        %v911 = vsel %vm901, %v897, 1326507024
        %v912 = vsel %vm900, %v894, %v911
        %v913 = vsel %vm899, %v910, %v912
        %v914 = vshll.u32 %v874, 8
        %v915 = vmul.u32.u64.compose %v914, %v913
        %v916 = vextract.low.u32 %v915
        %v917 = vextract.high.u32 %v915
        %v918 = vmul.u32.u64.compose %v914, %v909
        %v919 = vextract.low.u32 %v918
        %v920 = vextract.high.u32 %v918
        %v921 = vmul.u32 %v914, %v905
        %v922 = vadd.s32 %v917, %v919
        %vm923 = vc.u32 %v917, %v919
        %v924 = vadd.s32 %v920, 1
        %v925 = vsel %vm923, %v924, %v920
        %v926 = vadd.s32 %v921, %v925
        %v927 = vadd.s32 %v926, 536870912
        %v928 = vshrl.u32 %v927, 30
        %v929 = vshll.u32 %v928, 30
        %v930 = vsub.s32 %v926, %v929
        %vm931 = vcmp.lt.s32.totalorder %v930, 0
        %v932 = vsub.s32 0, %v930
        %v933 = vsel %vm931, %v932, %v930
        %v934 = vclz %v933
        %v935 = vsub.s32 %v934, 2
        %vm936 = vcmp.gt.s32.totalorder 0, %v935
        %v937 = vsel %vm936, 0, %v935
        %v938 = vsub.s32 32, %v937
        %v939 = vshll.u32 %v930, %v937
        %v940 = vshrl.u32 %v922, %v938
        %v941 = vor.u32 %v939, %v940
        %v942 = vsub.s32 4294967266, %v937
        %v943 = vadd.s32 %v942, 127
        %v944 = vshll.u32 %v943, 23
        %v945 = vor.u32 4788187, %v944
        %v946 = vand.u32 2147483647, %v945
        %v948 = vcvt.s32.f32 %v941
        %v949 = vmul.f32 %v948, %v946
        %v950 = vxor.u32 %v949, 2147483648
        %v951 = vsel %vm868, %v950, %v949
        %v952 = vsub.s32 4, %v928
        %v953 = vsel %vm868, %v952, %v928
        %v954 = vsel %vm867, %v759, %v951
        %v955 = vsel %vm867, 0, %v953
        %v956 = vcosq.f32.pop %v954
        %v957 = vsinq.f32.pop %v954
        %vm958 = vweird.f32 %v759
        %v959 = vadd.s32 %v955, 3
        %v960 = vand.u32 %v959, 3
        %vm961 = vcmp.lt.s32.totalorder %v960, 2
        %vm962 = vcmp.eq.s32.totalorder %v960, 0
        %v963 = vxor.u32 %v957, 2147483648
        %v964 = vsel %vm962, %v956, %v963
        %vm965 = vcmp.eq.s32.totalorder %v960, 2
        %v966 = vxor.u32 %v956, 2147483648
        %v967 = vsel %vm965, %v966, %v957
        %v968 = vsel %vm961, %v964, %v967
        %v969 = vsel %vm958, nan, %v968
        %v970 = vmul.f32 %v865, 0.1
        %v971 = vmul.f32 %v969, 0.1
        %v972 = vadd.f32 %v756, %v970
        %v973 = vadd.f32 %v759, %v971
        %v974 = vmul.f32 %v972, 0.35355338
        %v975 = vmul.f32 %v973, 0.35355338
        %v976 = vpack.c.bf16 %v975, %v974
        %vm977 = vcmask 64512
        %v979 = vsel %vm977, %v976, 0
        %v982 = vsel %vm977, %v701, 0
        %984 = vmatprep.subr.bf16.mxu0 0
        %985 = vmatpush1.bf16.xpose.msra.mxu0 %v982
        %986 = vmatprep.subr.bf16.mxu0 0
        %987 = vmatpush1.bf16.xpose.msra.mxu0 0
        %988 = vmatprep.subr.bf16.mxu0 0
        %989 = vmatpush1.bf16.xpose.msra.mxu0 0
        %990 = vmatprep.subr.bf16.mxu0 0
        %991 = vmatpush1.bf16.xpose.msra.mxu0 0
        %992 = vmatprep.subr.bf16.mxu0 0
        %993 = vmatpush1.bf16.xpose.msra.mxu0 0
        %994 = vmatprep.subr.bf16.mxu0 0
        %995 = vmatpush1.bf16.xpose.msra.mxu0 0
        %996 = vmatprep.subr.bf16.mxu0 0
        %997 = vmatpush1.bf16.xpose.msra.mxu0 0
        %998 = vmatprep.subr.bf16.mxu0 0
        %999 = vmatpush1.bf16.xpose.msra.mxu0 0
        %1000 = vmatprep.subr.bf16.mxu0 0
        %1001 = vmatpush1.bf16.xpose.msra.mxu0 0
        %1002 = vmatprep.subr.bf16.mxu0 0
        %1003 = vmatpush1.bf16.xpose.msra.mxu0 0
        %1004 = vmatprep.subr.bf16.mxu0 0
        %1005 = vmatpush1.bf16.xpose.msra.mxu0 0
        %1006 = vmatprep.subr.bf16.mxu0 0
        %1007 = vmatpush1.bf16.xpose.msra.mxu0 0
        %1008 = vmatprep.subr.bf16.mxu0 0
        %1009 = vmatpush1.bf16.xpose.msra.mxu0 0
        %1010 = vmatprep.subr.bf16.mxu0 0
        %1011 = vmatpush1.bf16.xpose.msra.mxu0 0
        %1012 = vmatprep.subr.bf16.mxu0 0
        %1013 = vmatpush1.bf16.xpose.msra.mxu0 0
        %1014 = vmatprep.subr.bf16.mxu0 0
        %1015 = vmatpush1.bf16.xpose.msra.mxu0 0
        %1016 = vmatprep.mubr.bf16.mxu0 0
        %1017 = vmatmul.mubr.bf16.gmra.mrb[0].mxu0 %v979
        %v1018 = vpop.f32.mrb[0].mxu0
        %v1019 = vadd.f32 0.0, %v1018
        %v1020 = vpop.f32.mrb[0].mxu0
        %v1021 = vpop.f32.mrb[0].mxu0
        %v1022 = vadd.f32 0.0, %v1021
        %v1023 = vpop.f32.mrb[0].mxu0
        %1024 = vdwg.mxu0
        %vm1025 = vcmask 130048
        %v1026 = vsel %vm1025, %v1019, -inf
        %1027 = vmax.xlane.f32.xlu0 %v1026
        %v1028 = vpop.xlane.xlu0 %1027
        %v1029 = vsel %vm1025, %v1022, -inf
        %1030 = vmax.xlane.f32.xlu0 %v1029
        %v1031 = vpop.xlane.xlu0 %1030
        %v1032 = vsub.f32 %v1019, %v1028
        %v1033 = vsub.f32 %v1022, %v1031
        %v1034 = vmul.f32 %v1032, 1.442695
        %v1035 = vpow.pop %v1034
        %v1036 = vmul.f32 %v1033, 1.442695
        %v1037 = vpow.pop %v1036
        %v1038 = vsel %vm1025, %v1035, 0.0
        %1039 = vadd.xlane.f32.xlu0 %v1038
        %v1040 = vpop.xlane.xlu0 %1039
        %v1041 = vsel %vm1025, %v1037, 0.0
        %1042 = vadd.xlane.f32.xlu0 %v1041
        %v1043 = vpop.xlane.xlu0 %1042
        %v1044 = vpack.c.bf16 %v1037, %v1035
        %v1046 = vsel %vm1025, %v1044, 0
        %1048 = vmatprep.subr.bf16.mxu0 0
        %1049 = vmatpush1.bf16.msra.mxu0 %v702
        %1050 = vmatprep.subr.bf16.mxu0 0
        %1051 = vmatpush1.bf16.msra.mxu0 0
        %1052 = vmatprep.subr.bf16.mxu0 0
        %1053 = vmatpush1.bf16.msra.mxu0 0
        %1054 = vmatprep.subr.bf16.mxu0 0
        %1055 = vmatpush1.bf16.msra.mxu0 0
        %1056 = vmatprep.subr.bf16.mxu0 0
        %1057 = vmatpush1.bf16.msra.mxu0 0
        %1058 = vmatprep.subr.bf16.mxu0 0
        %1059 = vmatpush1.bf16.msra.mxu0 0
        %1060 = vmatprep.subr.bf16.mxu0 0
        %1061 = vmatpush1.bf16.msra.mxu0 0
        %1062 = vmatprep.subr.bf16.mxu0 0
        %1063 = vmatpush1.bf16.msra.mxu0 0
        %1064 = vmatprep.subr.bf16.mxu0 0
        %1065 = vmatpush1.bf16.msra.mxu0 0
        %1066 = vmatprep.subr.bf16.mxu0 0
        %1067 = vmatpush1.bf16.msra.mxu0 0
        %1068 = vmatprep.subr.bf16.mxu0 0
        %1069 = vmatpush1.bf16.msra.mxu0 0
        %1070 = vmatprep.subr.bf16.mxu0 0
        %1071 = vmatpush1.bf16.msra.mxu0 0
        %1072 = vmatprep.subr.bf16.mxu0 0
        %1073 = vmatpush1.bf16.msra.mxu0 0
        %1074 = vmatprep.subr.bf16.mxu0 0
        %1075 = vmatpush1.bf16.msra.mxu0 0
        %1076 = vmatprep.subr.bf16.mxu0 0
        %1077 = vmatpush1.bf16.msra.mxu0 0
        %1078 = vmatprep.subr.bf16.mxu0 0
        %1079 = vmatpush1.bf16.msra.mxu0 0
        %1080 = vmatprep.mubr.bf16.mxu0 0
        %1081 = vmatmul.mubr.bf16.gmra.mrb[0].mxu0 %v1046
        %v1082 = vpop.f32.mrb[0].mxu0
        %v1083 = vadd.f32 0.0, %v1082
        %v1084 = vpop.f32.mrb[0].mxu0
        %v1085 = vpop.f32.mrb[0].mxu0
        %v1086 = vadd.f32 0.0, %v1085
        %v1087 = vpop.f32.mrb[0].mxu0
        %1088 = vdwg.mxu0
        %v1089 = vrcp.pop %v1040
        %v1090 = vrcp.pop %v1043
        %v1091 = vmul.f32 %v1083, %v1089
        %v1092 = vmul.f32 %v1086, %v1090
        %v1093 = vpack.c.bf16 %v1092, %v1091
        %1095 = vrot.lane.b32.xlu0 %v976, 120
        %v1096 = vpop.permute.xlu0 %1095
        %1098 = vrot.lane.b32.xlu0 %v701, 120
        %v1099 = vpop.permute.xlu0 %1098
        %v1101 = vsel %vm977, %v1096, 0
        %v1104 = vsel %vm977, %v1099, 0
        %1106 = vmatprep.subr.bf16.mxu0 0
        %1107 = vmatpush1.bf16.xpose.msra.mxu0 %v1104
        %1108 = vmatprep.subr.bf16.mxu0 0
        %1109 = vmatpush1.bf16.xpose.msra.mxu0 0
        %1110 = vmatprep.subr.bf16.mxu0 0
        %1111 = vmatpush1.bf16.xpose.msra.mxu0 0
        %1112 = vmatprep.subr.bf16.mxu0 0
        %1113 = vmatpush1.bf16.xpose.msra.mxu0 0
        %1114 = vmatprep.subr.bf16.mxu0 0
        %1115 = vmatpush1.bf16.xpose.msra.mxu0 0
        %1116 = vmatprep.subr.bf16.mxu0 0
        %1117 = vmatpush1.bf16.xpose.msra.mxu0 0
        %1118 = vmatprep.subr.bf16.mxu0 0
        %1119 = vmatpush1.bf16.xpose.msra.mxu0 0
        %1120 = vmatprep.subr.bf16.mxu0 0
        %1121 = vmatpush1.bf16.xpose.msra.mxu0 0
        %1122 = vmatprep.subr.bf16.mxu0 0
        %1123 = vmatpush1.bf16.xpose.msra.mxu0 0
        %1124 = vmatprep.subr.bf16.mxu0 0
        %1125 = vmatpush1.bf16.xpose.msra.mxu0 0
        %1126 = vmatprep.subr.bf16.mxu0 0
        %1127 = vmatpush1.bf16.xpose.msra.mxu0 0
        %1128 = vmatprep.subr.bf16.mxu0 0
        %1129 = vmatpush1.bf16.xpose.msra.mxu0 0
        %1130 = vmatprep.subr.bf16.mxu0 0
        %1131 = vmatpush1.bf16.xpose.msra.mxu0 0
        %1132 = vmatprep.subr.bf16.mxu0 0
        %1133 = vmatpush1.bf16.xpose.msra.mxu0 0
        %1134 = vmatprep.subr.bf16.mxu0 0
        %1135 = vmatpush1.bf16.xpose.msra.mxu0 0
        %1136 = vmatprep.subr.bf16.mxu0 0
        %1137 = vmatpush1.bf16.xpose.msra.mxu0 0
        %1138 = vmatprep.mubr.bf16.mxu0 0
        %1139 = vmatmul.mubr.bf16.gmra.mrb[0].mxu0 %v1101
        %v1140 = vpop.f32.mrb[0].mxu0
        %v1141 = vadd.f32 0.0, %v1140
        %v1142 = vpop.f32.mrb[0].mxu0
        %v1143 = vpop.f32.mrb[0].mxu0
        %v1144 = vadd.f32 0.0, %v1143
        %v1145 = vpop.f32.mrb[0].mxu0
        %1146 = vdwg.mxu0
        %v1147 = vsel %vm1025, %v1141, -inf
        %1148 = vmax.xlane.f32.xlu0 %v1147
        %v1149 = vpop.xlane.xlu0 %1148
        %v1150 = vsel %vm1025, %v1144, -inf
        %1151 = vmax.xlane.f32.xlu0 %v1150
        %v1152 = vpop.xlane.xlu0 %1151
        %v1153 = vsub.f32 %v1141, %v1149
        %v1154 = vsub.f32 %v1144, %v1152
        %v1155 = vmul.f32 %v1153, 1.442695
        %v1156 = vpow.pop %v1155
        %v1157 = vmul.f32 %v1154, 1.442695
        %v1158 = vpow.pop %v1157
        %v1159 = vsel %vm1025, %v1156, 0.0
        %1160 = vadd.xlane.f32.xlu0 %v1159
        %v1161 = vpop.xlane.xlu0 %1160
        %v1162 = vsel %vm1025, %v1158, 0.0
        %1163 = vadd.xlane.f32.xlu0 %v1162
        %v1164 = vpop.xlane.xlu0 %1163
        %v1165 = vpack.c.bf16 %v1158, %v1156
        %1167 = vrot.lane.b32.xlu0 %v702, 120
        %v1168 = vpop.permute.xlu0 %1167
        %v1171 = vsel %vm1025, %v1165, 0
        %1173 = vmatprep.subr.bf16.mxu0 0
        %1174 = vmatpush1.bf16.msra.mxu0 %v1168
        %1175 = vmatprep.subr.bf16.mxu0 0
        %1176 = vmatpush1.bf16.msra.mxu0 0
        %1177 = vmatprep.subr.bf16.mxu0 0
        %1178 = vmatpush1.bf16.msra.mxu0 0
        %1179 = vmatprep.subr.bf16.mxu0 0
        %1180 = vmatpush1.bf16.msra.mxu0 0
        %1181 = vmatprep.subr.bf16.mxu0 0
        %1182 = vmatpush1.bf16.msra.mxu0 0
        %1183 = vmatprep.subr.bf16.mxu0 0
        %1184 = vmatpush1.bf16.msra.mxu0 0
        %1185 = vmatprep.subr.bf16.mxu0 0
        %1186 = vmatpush1.bf16.msra.mxu0 0
        %1187 = vmatprep.subr.bf16.mxu0 0
        %1188 = vmatpush1.bf16.msra.mxu0 0
        %1189 = vmatprep.subr.bf16.mxu0 0
        %1190 = vmatpush1.bf16.msra.mxu0 0
        %1191 = vmatprep.subr.bf16.mxu0 0
        %1192 = vmatpush1.bf16.msra.mxu0 0
        %1193 = vmatprep.subr.bf16.mxu0 0
        %1194 = vmatpush1.bf16.msra.mxu0 0
        %1195 = vmatprep.subr.bf16.mxu0 0
        %1196 = vmatpush1.bf16.msra.mxu0 0
        %1197 = vmatprep.subr.bf16.mxu0 0
        %1198 = vmatpush1.bf16.msra.mxu0 0
        %1199 = vmatprep.subr.bf16.mxu0 0
        %1200 = vmatpush1.bf16.msra.mxu0 0
        %1201 = vmatprep.subr.bf16.mxu0 0
        %1202 = vmatpush1.bf16.msra.mxu0 0
        %1203 = vmatprep.subr.bf16.mxu0 0
        %1204 = vmatpush1.bf16.msra.mxu0 0
        %1205 = vmatprep.mubr.bf16.mxu0 0
        %1206 = vmatmul.mubr.bf16.gmra.mrb[0].mxu0 %v1171
        %v1207 = vpop.f32.mrb[0].mxu0
        %v1208 = vadd.f32 0.0, %v1207
        %v1209 = vpop.f32.mrb[0].mxu0
        %v1210 = vpop.f32.mrb[0].mxu0
        %v1211 = vadd.f32 0.0, %v1210
        %v1212 = vpop.f32.mrb[0].mxu0
        %1213 = vdwg.mxu0
        %v1214 = vrcp.pop %v1161
        %v1215 = vrcp.pop %v1164
        %v1216 = vmul.f32 %v1208, %v1214
        %v1217 = vmul.f32 %v1211, %v1215
        %v1218 = vpack.c.bf16 %v1217, %v1216
        %1219 = vrot.lane.b32.xlu0 %v976, 112
        %v1220 = vpop.permute.xlu0 %1219
        %1221 = vrot.lane.b32.xlu0 %v701, 112
        %v1222 = vpop.permute.xlu0 %1221
        %v1224 = vsel %vm977, %v1220, 0
        %v1227 = vsel %vm977, %v1222, 0
        %1229 = vmatprep.subr.bf16.mxu0 0
        %1230 = vmatpush1.bf16.xpose.msra.mxu0 %v1227
        %1231 = vmatprep.subr.bf16.mxu0 0
        %1232 = vmatpush1.bf16.xpose.msra.mxu0 0
        %1233 = vmatprep.subr.bf16.mxu0 0
        %1234 = vmatpush1.bf16.xpose.msra.mxu0 0
        %1235 = vmatprep.subr.bf16.mxu0 0
        %1236 = vmatpush1.bf16.xpose.msra.mxu0 0
        %1237 = vmatprep.subr.bf16.mxu0 0
        %1238 = vmatpush1.bf16.xpose.msra.mxu0 0
        %1239 = vmatprep.subr.bf16.mxu0 0
        %1240 = vmatpush1.bf16.xpose.msra.mxu0 0
        %1241 = vmatprep.subr.bf16.mxu0 0
        %1242 = vmatpush1.bf16.xpose.msra.mxu0 0
        %1243 = vmatprep.subr.bf16.mxu0 0
        %1244 = vmatpush1.bf16.xpose.msra.mxu0 0
        %1245 = vmatprep.subr.bf16.mxu0 0
        %1246 = vmatpush1.bf16.xpose.msra.mxu0 0
        %1247 = vmatprep.subr.bf16.mxu0 0
        %1248 = vmatpush1.bf16.xpose.msra.mxu0 0
        %1249 = vmatprep.subr.bf16.mxu0 0
        %1250 = vmatpush1.bf16.xpose.msra.mxu0 0
        %1251 = vmatprep.subr.bf16.mxu0 0
        %1252 = vmatpush1.bf16.xpose.msra.mxu0 0
        %1253 = vmatprep.subr.bf16.mxu0 0
        %1254 = vmatpush1.bf16.xpose.msra.mxu0 0
        %1255 = vmatprep.subr.bf16.mxu0 0
        %1256 = vmatpush1.bf16.xpose.msra.mxu0 0
        %1257 = vmatprep.subr.bf16.mxu0 0
        %1258 = vmatpush1.bf16.xpose.msra.mxu0 0
        %1259 = vmatprep.subr.bf16.mxu0 0
        %1260 = vmatpush1.bf16.xpose.msra.mxu0 0
        %1261 = vmatprep.mubr.bf16.mxu0 0
        %1262 = vmatmul.mubr.bf16.gmra.mrb[0].mxu0 %v1224
        %v1263 = vpop.f32.mrb[0].mxu0
        %v1264 = vadd.f32 0.0, %v1263
        %v1265 = vpop.f32.mrb[0].mxu0
        %v1266 = vpop.f32.mrb[0].mxu0
        %v1267 = vadd.f32 0.0, %v1266
        %v1268 = vpop.f32.mrb[0].mxu0
        %1269 = vdwg.mxu0
        %v1270 = vsel %vm1025, %v1264, -inf
        %1271 = vmax.xlane.f32.xlu0 %v1270
        %v1272 = vpop.xlane.xlu0 %1271
        %v1273 = vsel %vm1025, %v1267, -inf
        %1274 = vmax.xlane.f32.xlu0 %v1273
        %v1275 = vpop.xlane.xlu0 %1274
        %v1276 = vsub.f32 %v1264, %v1272
        %v1277 = vsub.f32 %v1267, %v1275
        %v1278 = vmul.f32 %v1276, 1.442695
        %v1279 = vpow.pop %v1278
        %v1280 = vmul.f32 %v1277, 1.442695
        %v1281 = vpow.pop %v1280
        %v1282 = vsel %vm1025, %v1279, 0.0
        %1283 = vadd.xlane.f32.xlu0 %v1282
        %v1284 = vpop.xlane.xlu0 %1283
        %v1285 = vsel %vm1025, %v1281, 0.0
        %1286 = vadd.xlane.f32.xlu0 %v1285
        %v1287 = vpop.xlane.xlu0 %1286
        %v1288 = vpack.c.bf16 %v1281, %v1279
        %1289 = vrot.lane.b32.xlu0 %v702, 112
        %v1290 = vpop.permute.xlu0 %1289
        %v1293 = vsel %vm1025, %v1288, 0
        %1295 = vmatprep.subr.bf16.mxu0 0
        %1296 = vmatpush1.bf16.msra.mxu0 %v1290
        %1297 = vmatprep.subr.bf16.mxu0 0
        %1298 = vmatpush1.bf16.msra.mxu0 0
        %1299 = vmatprep.subr.bf16.mxu0 0
        %1300 = vmatpush1.bf16.msra.mxu0 0
        %1301 = vmatprep.subr.bf16.mxu0 0
        %1302 = vmatpush1.bf16.msra.mxu0 0
        %1303 = vmatprep.subr.bf16.mxu0 0
        %1304 = vmatpush1.bf16.msra.mxu0 0
        %1305 = vmatprep.subr.bf16.mxu0 0
        %1306 = vmatpush1.bf16.msra.mxu0 0
        %1307 = vmatprep.subr.bf16.mxu0 0
        %1308 = vmatpush1.bf16.msra.mxu0 0
        %1309 = vmatprep.subr.bf16.mxu0 0
        %1310 = vmatpush1.bf16.msra.mxu0 0
        %1311 = vmatprep.subr.bf16.mxu0 0
        %1312 = vmatpush1.bf16.msra.mxu0 0
        %1313 = vmatprep.subr.bf16.mxu0 0
        %1314 = vmatpush1.bf16.msra.mxu0 0
        %1315 = vmatprep.subr.bf16.mxu0 0
        %1316 = vmatpush1.bf16.msra.mxu0 0
        %1317 = vmatprep.subr.bf16.mxu0 0
        %1318 = vmatpush1.bf16.msra.mxu0 0
        %1319 = vmatprep.subr.bf16.mxu0 0
        %1320 = vmatpush1.bf16.msra.mxu0 0
        %1321 = vmatprep.subr.bf16.mxu0 0
        %1322 = vmatpush1.bf16.msra.mxu0 0
        %1323 = vmatprep.subr.bf16.mxu0 0
        %1324 = vmatpush1.bf16.msra.mxu0 0
        %1325 = vmatprep.subr.bf16.mxu0 0
        %1326 = vmatpush1.bf16.msra.mxu0 0
        %1327 = vmatprep.mubr.bf16.mxu0 0
        %1328 = vmatmul.mubr.bf16.gmra.mrb[0].mxu0 %v1293
        %v1329 = vpop.f32.mrb[0].mxu0
        %v1330 = vadd.f32 0.0, %v1329
        %v1331 = vpop.f32.mrb[0].mxu0
        %v1332 = vpop.f32.mrb[0].mxu0
        %v1333 = vadd.f32 0.0, %v1332
        %v1334 = vpop.f32.mrb[0].mxu0
        %1335 = vdwg.mxu0
        %v1336 = vrcp.pop %v1284
        %v1337 = vrcp.pop %v1287
        %v1338 = vmul.f32 %v1330, %v1336
        %v1339 = vmul.f32 %v1333, %v1337
        %v1340 = vpack.c.bf16 %v1339, %v1338
        %1341 = vrot.lane.b32.xlu0 %v976, 104
        %v1342 = vpop.permute.xlu0 %1341
        %1343 = vrot.lane.b32.xlu0 %v701, 104
        %v1344 = vpop.permute.xlu0 %1343
        %v1346 = vsel %vm977, %v1342, 0
        %v1349 = vsel %vm977, %v1344, 0
        %1351 = vmatprep.subr.bf16.mxu0 0
        %1352 = vmatpush1.bf16.xpose.msra.mxu0 %v1349
        %1353 = vmatprep.subr.bf16.mxu0 0
        %1354 = vmatpush1.bf16.xpose.msra.mxu0 0
        %1355 = vmatprep.subr.bf16.mxu0 0
        %1356 = vmatpush1.bf16.xpose.msra.mxu0 0
        %1357 = vmatprep.subr.bf16.mxu0 0
        %1358 = vmatpush1.bf16.xpose.msra.mxu0 0
        %1359 = vmatprep.subr.bf16.mxu0 0
        %1360 = vmatpush1.bf16.xpose.msra.mxu0 0
        %1361 = vmatprep.subr.bf16.mxu0 0
        %1362 = vmatpush1.bf16.xpose.msra.mxu0 0
        %1363 = vmatprep.subr.bf16.mxu0 0
        %1364 = vmatpush1.bf16.xpose.msra.mxu0 0
        %1365 = vmatprep.subr.bf16.mxu0 0
        %1366 = vmatpush1.bf16.xpose.msra.mxu0 0
        %1367 = vmatprep.subr.bf16.mxu0 0
        %1368 = vmatpush1.bf16.xpose.msra.mxu0 0
        %1369 = vmatprep.subr.bf16.mxu0 0
        %1370 = vmatpush1.bf16.xpose.msra.mxu0 0
        %1371 = vmatprep.subr.bf16.mxu0 0
        %1372 = vmatpush1.bf16.xpose.msra.mxu0 0
        %1373 = vmatprep.subr.bf16.mxu0 0
        %1374 = vmatpush1.bf16.xpose.msra.mxu0 0
        %1375 = vmatprep.subr.bf16.mxu0 0
        %1376 = vmatpush1.bf16.xpose.msra.mxu0 0
        %1377 = vmatprep.subr.bf16.mxu0 0
        %1378 = vmatpush1.bf16.xpose.msra.mxu0 0
        %1379 = vmatprep.subr.bf16.mxu0 0
        %1380 = vmatpush1.bf16.xpose.msra.mxu0 0
        %1381 = vmatprep.subr.bf16.mxu0 0
        %1382 = vmatpush1.bf16.xpose.msra.mxu0 0
        %1383 = vmatprep.mubr.bf16.mxu0 0
        %1384 = vmatmul.mubr.bf16.gmra.mrb[0].mxu0 %v1346
        %v1385 = vpop.f32.mrb[0].mxu0
        %v1386 = vadd.f32 0.0, %v1385
        %v1387 = vpop.f32.mrb[0].mxu0
        %v1388 = vpop.f32.mrb[0].mxu0
        %v1389 = vadd.f32 0.0, %v1388
        %v1390 = vpop.f32.mrb[0].mxu0
        %1391 = vdwg.mxu0
        %v1392 = vsel %vm1025, %v1386, -inf
        %1393 = vmax.xlane.f32.xlu0 %v1392
        %v1394 = vpop.xlane.xlu0 %1393
        %v1395 = vsel %vm1025, %v1389, -inf
        %1396 = vmax.xlane.f32.xlu0 %v1395
        %v1397 = vpop.xlane.xlu0 %1396
        %v1398 = vsub.f32 %v1386, %v1394
        %v1399 = vsub.f32 %v1389, %v1397
        %v1400 = vmul.f32 %v1398, 1.442695
        %v1401 = vpow.pop %v1400
        %v1402 = vmul.f32 %v1399, 1.442695
        %v1403 = vpow.pop %v1402
        %v1404 = vsel %vm1025, %v1401, 0.0
        %1405 = vadd.xlane.f32.xlu0 %v1404
        %v1406 = vpop.xlane.xlu0 %1405
        %v1407 = vsel %vm1025, %v1403, 0.0
        %1408 = vadd.xlane.f32.xlu0 %v1407
        %v1409 = vpop.xlane.xlu0 %1408
        %v1410 = vpack.c.bf16 %v1403, %v1401
        %1411 = vrot.lane.b32.xlu0 %v702, 104
        %v1412 = vpop.permute.xlu0 %1411
        %v1415 = vsel %vm1025, %v1410, 0
        %1417 = vmatprep.subr.bf16.mxu0 0
        %1418 = vmatpush1.bf16.msra.mxu0 %v1412
        %1419 = vmatprep.subr.bf16.mxu0 0
        %1420 = vmatpush1.bf16.msra.mxu0 0
        %1421 = vmatprep.subr.bf16.mxu0 0
        %1422 = vmatpush1.bf16.msra.mxu0 0
        %1423 = vmatprep.subr.bf16.mxu0 0
        %1424 = vmatpush1.bf16.msra.mxu0 0
        %1425 = vmatprep.subr.bf16.mxu0 0
        %1426 = vmatpush1.bf16.msra.mxu0 0
        %1427 = vmatprep.subr.bf16.mxu0 0
        %1428 = vmatpush1.bf16.msra.mxu0 0
        %1429 = vmatprep.subr.bf16.mxu0 0
        %1430 = vmatpush1.bf16.msra.mxu0 0
        %1431 = vmatprep.subr.bf16.mxu0 0
        %1432 = vmatpush1.bf16.msra.mxu0 0
        %1433 = vmatprep.subr.bf16.mxu0 0
        %1434 = vmatpush1.bf16.msra.mxu0 0
        %1435 = vmatprep.subr.bf16.mxu0 0
        %1436 = vmatpush1.bf16.msra.mxu0 0
        %1437 = vmatprep.subr.bf16.mxu0 0
        %1438 = vmatpush1.bf16.msra.mxu0 0
        %1439 = vmatprep.subr.bf16.mxu0 0
        %1440 = vmatpush1.bf16.msra.mxu0 0
        %1441 = vmatprep.subr.bf16.mxu0 0
        %1442 = vmatpush1.bf16.msra.mxu0 0
        %1443 = vmatprep.subr.bf16.mxu0 0
        %1444 = vmatpush1.bf16.msra.mxu0 0
        %1445 = vmatprep.subr.bf16.mxu0 0
        %1446 = vmatpush1.bf16.msra.mxu0 0
        %1447 = vmatprep.subr.bf16.mxu0 0
        %1448 = vmatpush1.bf16.msra.mxu0 0
        %1449 = vmatprep.mubr.bf16.mxu0 0
        %1450 = vmatmul.mubr.bf16.gmra.mrb[0].mxu0 %v1415
        %v1451 = vpop.f32.mrb[0].mxu0
        %v1452 = vadd.f32 0.0, %v1451
        %v1453 = vpop.f32.mrb[0].mxu0
        %v1454 = vpop.f32.mrb[0].mxu0
        %v1455 = vadd.f32 0.0, %v1454
        %v1456 = vpop.f32.mrb[0].mxu0
        %1457 = vdwg.mxu0
        %v1458 = vrcp.pop %v1406
        %v1459 = vrcp.pop %v1409
        %v1460 = vmul.f32 %v1452, %v1458
        %v1461 = vmul.f32 %v1455, %v1459
        %v1462 = vpack.c.bf16 %v1461, %v1460
        %1464 = vrot.lane.b32.xlu0 %v1218, 8
        %v1465 = vpop.permute.xlu0 %1464
        %1467 = vrot.lane.b32.xlu0 %v1340, 16
        %v1468 = vpop.permute.xlu0 %1467
        %1470 = vrot.lane.b32.xlu0 %v1462, 24
        %v1471 = vpop.permute.xlu0 %1470
        %v1474 = vsel %vm977, %v1093, %v1465
        %v1476 = vsel %vm1025, %v1474, %v1468
        %vm1477 = vcmask 195584
        %v1479 = vsel %vm1477, %v1476, %v1471
        %s1480 = smul.addr %s355, 4
        %s1481 = scalar_lea.vmem [#allocation11], %s1480
        %v1482 = vld [vmem:[%s1481] sm:$0xf]
        %v1483 = vld [vmem:[%s1481 + $0x4] sm:$0xf]
        %v1484 = vld [vmem:[%s1481 + $0x8] sm:$0xf]
        %v1485 = vld [vmem:[%s1481 + $0xc] sm:$0xf]
        %v1490 = vunpack.c.l.b16 %v1482
        %v1491 = vunpack.c.l.b16 %v1483
        %v1492 = vunpack.c.l.b16 %v1484
        %v1493 = vunpack.c.l.b16 %v1485
        %v1494 = vpack.c.b16 %v1491, %v1490
        %v1495 = vpack.c.b16 %v1493, %v1492
        %v1498 = vsel %vm379, %v1479, 0
        %1500 = vmatprep.subr.bf16.mxu0 0
        %1501 = vmatpush1.bf16.msra.mxu0 %v1494
        %1502 = vmatprep.subr.bf16.mxu0 0
        %1503 = vmatpush1.bf16.msra.mxu0 %v1495
        %1504 = vmatprep.subr.bf16.mxu0 0
        %1505 = vmatpush1.bf16.msra.mxu0 0
        %1506 = vmatprep.subr.bf16.mxu0 0
        %1507 = vmatpush1.bf16.msra.mxu0 0
        %1508 = vmatprep.subr.bf16.mxu0 0
        %1509 = vmatpush1.bf16.msra.mxu0 0
        %1510 = vmatprep.subr.bf16.mxu0 0
        %1511 = vmatpush1.bf16.msra.mxu0 0
        %1512 = vmatprep.subr.bf16.mxu0 0
        %1513 = vmatpush1.bf16.msra.mxu0 0
        %1514 = vmatprep.subr.bf16.mxu0 0
        %1515 = vmatpush1.bf16.msra.mxu0 0
        %1516 = vmatprep.subr.bf16.mxu0 0
        %1517 = vmatpush1.bf16.msra.mxu0 0
        %1518 = vmatprep.subr.bf16.mxu0 0
        %1519 = vmatpush1.bf16.msra.mxu0 0
        %1520 = vmatprep.subr.bf16.mxu0 0
        %1521 = vmatpush1.bf16.msra.mxu0 0
        %1522 = vmatprep.subr.bf16.mxu0 0
        %1523 = vmatpush1.bf16.msra.mxu0 0
        %1524 = vmatprep.subr.bf16.mxu0 0
        %1525 = vmatpush1.bf16.msra.mxu0 0
        %1526 = vmatprep.subr.bf16.mxu0 0
        %1527 = vmatpush1.bf16.msra.mxu0 0
        %1528 = vmatprep.subr.bf16.mxu0 0
        %1529 = vmatpush1.bf16.msra.mxu0 0
        %1530 = vmatprep.subr.bf16.mxu0 0
        %1531 = vmatpush1.bf16.msra.mxu0 0
        %1532 = vmatprep.mubr.bf16.mxu0 0
        %1533 = vmatmul.mubr.bf16.gmra.mrb[0].mxu0 %v1498
        %v1534 = vpop.f32.mrb[0].mxu0
        %v1535 = vadd.f32 0.0, %v1534
        %v1536 = vpop.f32.mrb[0].mxu0
        %v1537 = vpop.f32.mrb[0].mxu0
        %v1538 = vadd.f32 0.0, %v1537
        %v1539 = vpop.f32.mrb[0].mxu0
        %1540 = vdwg.mxu0
        %p1541 = scmp.eq.s32.totalorder %s33, 0
        // Predicated region
        $region65: #{tpu_custom_call.1} parent=43 // pred_check
          %p1542 = pneg %p1541
        $region66: #{tpu_custom_call.1} parent=43 // pred_check_branch
          %1544 = sbr.rel (%p1542) target = $region68
        $region67: #{tpu_custom_call.1} parent=43 // pred_region
          %1545 = vst.msk [vmem:[%s349] sm:$0xff] %vm379, %v1535
          %1546 = vst.msk [vmem:[%s349 + $0x8] sm:$0xff] %vm379, %v1538
        $region68: #{tpu_custom_call.1} parent=43 // pred_fallthru
          _
        %p1547 = scmp.ne.s32.totalorder %s33, 0
        // Predicated region
        $region69: #{tpu_custom_call.1} parent=43 // pred_check
          %p1548 = pneg %p1547
        $region70: #{tpu_custom_call.1} parent=43 // pred_check_branch
          %1550 = sbr.rel (%p1548) target = $region72
        $region71: #{tpu_custom_call.1} parent=43 // pred_region
          %v1551 = vld [vmem:[%s349] sm:$0xff]
          %v1552 = vld [vmem:[%s349 + $0x8] sm:$0xff]
          %v1553 = vadd.f32 %v1551, %v1535
          %v1554 = vadd.f32 %v1552, %v1538
          %1555 = vst.msk [vmem:[%s349] sm:$0xff] %vm379, %v1553
          %1556 = vst.msk [vmem:[%s349 + $0x8] sm:$0xff] %vm379, %v1554
        $region72: #{tpu_custom_call.1} parent=43 // pred_fallthru
          _
        %s1557 = sand.u32 %s186, 1
        %s1558 = scalar_lea.sflag [#allocation5], %s1557
        %s1559 = sand.u32 %s186, 1
        %s1560 = smul.addr %s1559, 16
        %s1561 = scalar_lea.vmem [#allocation12], %s1560
        // Predicated region
        $region73: #{tpu_custom_call.1} parent=43 // pred_check
          %p1562 = pneg %p196
        $region74: #{tpu_custom_call.1} parent=43 // pred_check_branch
          %1564 = sbr.rel (%p1562) target = $region76
        $region75: #{tpu_custom_call.1} parent=43 // pred_region
          %s1565 = smul.u32 2, %s32
          %s1567 = ssub.s32 256, 256
          %1568 = vsyncadd %s1558, %s1567
          %s1569 = smul.addr %s31, 2
          %s1570 = sadd.s32 %s1565, %s1569
          %s1571 = smul.addr %s1570, 128
          %s1572 = scalar_lea.hbm %s6, %s1571
          %s1573 = sshll.u32 %s1561, 4
          %s1574 = int_to_ptr.vmem [resolvable:$true] %s1573
          %1579 = dma.vmem_to_hbm [thread:$0]  %s1574, 256, %s1572, %s1558, 128, 128, 8
        $region76: #{tpu_custom_call.1} parent=43 // pred_fallthru
          _
      $region44: #{tpu_custom_call.1} parent=5 // pred_fallthru
        _
      %p1580 = scmp.le.s32.totalorder 2, %s21
      // Predicated region
      $region77: #{tpu_custom_call.1} parent=5 // pred_check
        %p1581 = pneg %p1580
      $region78: #{tpu_custom_call.1} parent=5 // pred_check_branch
        %1583 = sbr.rel (%p1581) target = $region80
      $region79: #{tpu_custom_call.1} parent=5 // pred_region
        %s1584 = ssub.s32 %s21, 2
        // Predicated region
        $region81: #{tpu_custom_call.1} parent=79 // pred_check
          %p1585 = pneg %p202
        $region82: #{tpu_custom_call.1} parent=79 // pred_check_branch
          %1587 = sbr.rel (%p1585) target = $region84
        $region83: #{tpu_custom_call.1} parent=79 // pred_region
          %s1588 = sand.u32 %s187, 1
          %s1589 = scalar_lea.sflag [#allocation5], %s1588
          %s1590 = sand.u32 %s187, 1
          %s1591 = smul.addr %s1590, 16
          %s1592 = scalar_lea.vmem [#allocation12], %s1591
          %1593 = dma.done %s1589, 256
        $region84: #{tpu_custom_call.1} parent=79 // pred_fallthru
          _
      $region80: #{tpu_custom_call.1} parent=5 // pred_fallthru
        _
    $region6: #{tpu_custom_call.1} parent=1 // loop_footer
      %s25 = sadd.s32 1, %s21
    $region7: #{tpu_custom_call.1} parent=1 // loop_footer_branch
      %20 = sbr.rel target = $region3
    $region8: #{tpu_custom_call.1} parent=1 // loop_exit
      _
    %1594 = vsyncpa [#allocation4], 1
    %s1595 = scalar_lea.sflag [#allocation4], 1
    %1596 = vsyncpa %s1595, 1
    %1597 = vsyncpa [#allocation7], 1
    %1598 = vsyncpa [#allocation10], 1
    %1599 = vsyncpa [#allocation5], 1
    %s1600 = scalar_lea.sflag [#allocation5], 1
    %1601 = vsyncpa %s1600, 1

</llo_original>
